<compile_context>
chip_gen: v5e
topology: v5e:2x2
jax: 0.10.0
libtpu: 0.0.40
codegen_flags: <defaults>
</compile_context>

<pallas_src>
import functools
import math

import numpy as np
import jax
import jax.numpy as jnp
from jax import lax
from jax.experimental import pallas as pl
from jax.experimental.pallas import tpu as pltpu

# ---------------- small synthetic config ----------------
NUM_CLASSES  = 5
TOKEN_KERNEL = 3
INPUT_DIM    = 16
D_MODEL      = 32
N_LAYERS     = 2
N_HEADS      = 4
N_KV_HEADS   = 2
HEAD_DIM     = D_MODEL // N_HEADS          # 8
INTERMEDIATE = 64
RMS_EPS      = 1e-6
ROPE_THETA   = 10000.0

Q_DIM    = N_HEADS * HEAD_DIM              # 32
KV_DIM   = N_KV_HEADS * HEAD_DIM           # 16
# Fused projection: [ q | k(GQA-expanded) | v(GQA-expanded) | rot_half(q) | rot_half(k_exp) ]
PROJ_DIM = 5 * Q_DIM                       # 160
GU_DIM   = 2 * INTERMEDIATE                # 128 (fused gate|up projection width)
HEAD_PAD = 128                             # lane-dense classification head width

MM_DTYPE = jnp.bfloat16                    # MXU operand dtype (f32 accumulation)


# ---------------- in-kernel helpers (traced inside the kernel) ----------------
def _mm(a, b):
    """MXU matmul: bf16 operands, f32 accumulation."""
    return jnp.dot(a.astype(MM_DTYPE), b.astype(MM_DTYPE),
                   preferred_element_type=jnp.float32)


def _rms(x, w):
    """RMSNorm in f32 (VPU/EUP math stays f32 on all chips)."""
    var = jnp.mean(x * x, axis=-1, keepdims=True)
    return x * lax.rsqrt(var + RMS_EPS) * w


# ---------------- the single fused Pallas kernel ----------------
def _fused_forward_kernel(xu_ref, tokw_ref, start_ref, stop_ref,
                          cos_ref, sin_ref,
                          ln1_ref, wqkv_ref, bqkv_ref, wo_ref,
                          ln2_ref, wgu_ref, wd_ref,
                          fnorm_ref, headw_ref, headb_ref,
                          o_ref, *, seq_len):
    """Full Qwen2FCLS forward for ONE batch element (grid=(B,), 'parallel')."""
    T = seq_len
    S = T + 2

    # ---- token embedding: circular conv unfolded to one matmul ----
    emb = _mm(xu_ref[0], tokw_ref[...])                     # (T, D) f32
    # Build the (S, D) hidden slab as a value (no partial-row HBM stores).
    x = jnp.concatenate([start_ref[...].astype(jnp.float32),
                         emb,
                         stop_ref[...].astype(jnp.float32)], axis=0)   # (S, D)

    # ---- hoisted per-invocation constants (not recomputed per layer) ----
    cos = cos_ref[...]                                      # (S, Q_DIM) f32
    sin = sin_ref[...]                                      # (S, Q_DIM) f32
    row = lax.broadcasted_iota(jnp.int32, (S, S), 0)
    col = lax.broadcasted_iota(jnp.int32, (S, S), 1)
    causal_bias = jnp.where(row >= col, jnp.float32(0.0), jnp.float32(-1e30))

    # ---- decoder stack (static Python loop, N_LAYERS=2) ----
    for l in range(N_LAYERS):
        # --- attention block ---
        h1 = _rms(x, ln1_ref[l])
        # one fused matmul produces q, GQA-expanded k/v and the pre-rotated
        # (rotate-half) q/k columns; 1/sqrt(head_dim) already folded into Wq.
        proj = _mm(h1, wqkv_ref[l]) + bqkv_ref[l]           # (S, PROJ_DIM)
        q_raw = proj[:, 0 * Q_DIM:1 * Q_DIM]
        k_raw = proj[:, 1 * Q_DIM:2 * Q_DIM]
        v     = proj[:, 2 * Q_DIM:3 * Q_DIM]
        q_rot = proj[:, 3 * Q_DIM:4 * Q_DIM]
        k_rot = proj[:, 4 * Q_DIM:5 * Q_DIM]
        # RoPE on full slabs: pure VPU fused multiply-adds, no per-head work.
        q = (q_raw * cos + q_rot * sin).astype(MM_DTYPE)    # (S, Q_DIM)
        k = (k_raw * cos + k_rot * sin).astype(MM_DTYPE)
        vb = v.astype(MM_DTYPE)

        # Head-major (H, S, HEAD_DIM) slabs for batched attention.
        qh = jnp.stack([q[:, h * HEAD_DIM:(h + 1) * HEAD_DIM]
                        for h in range(N_HEADS)], axis=0)
        kh = jnp.stack([k[:, h * HEAD_DIM:(h + 1) * HEAD_DIM]
                        for h in range(N_HEADS)], axis=0)
        vh = jnp.stack([vb[:, h * HEAD_DIM:(h + 1) * HEAD_DIM]
                        for h in range(N_HEADS)], axis=0)

        # Batched scores + softmax + outputs for all heads at once.
        s = jnp.einsum('hqd,hkd->hqk', qh, kh,
                       preferred_element_type=jnp.float32)  # (H, S, S)
        s = s + causal_bias[None, :, :]
        m = jnp.max(s, axis=-1, keepdims=True)
        p = jnp.exp(s - m)
        p = p * pl.reciprocal(jnp.sum(p, axis=-1, keepdims=True), approx=True)
        o = jnp.einsum('hqk,hkd->hqd', p.astype(MM_DTYPE), vh,
                       preferred_element_type=jnp.float32)  # (H, S, HEAD_DIM)
        attn = jnp.concatenate([o[h] for h in range(N_HEADS)], axis=-1)  # (S, D)

        x = x + _mm(attn, wo_ref[l])                        # residual

        # --- MLP block (SwiGLU, fused gate|up) ---
        h2 = _rms(x, ln2_ref[l])
        gu = _mm(h2, wgu_ref[l])                            # (S, 2*I)
        g = gu[:, :INTERMEDIATE]
        u = gu[:, INTERMEDIATE:]
        x = x + _mm(g * jax.nn.sigmoid(g) * u, wd_ref[l])   # residual

    # ---- final RMSNorm (last position only) + classification head ----
    xl = x[S - 1:S, :]                                      # (1, D)
    xn = _rms(xl, fnorm_ref[...])
    logits = _mm(xn, headw_ref[...]) + headb_ref[...]       # (1, HEAD_PAD)
    o_ref[0] = logits.astype(o_ref.dtype)


# ---------------- wrapper ----------------
def _full_spec(shape):
    n = len(shape)
    return pl.BlockSpec(shape, lambda b: (0,) * n)


def _rope_tables(S):
    """cos/sin rotate-half tables, pre-tiled to the full Q slab width (S, Q_DIM)."""
    pos = np.arange(S, dtype=np.float32)
    inv_freq = 1.0 / (ROPE_THETA ** (np.arange(0, HEAD_DIM, 2, dtype=np.float32)
                                     / HEAD_DIM))
    freqs = pos[:, None] * inv_freq[None, :]                # (S, HEAD_DIM/2)
    emb = np.concatenate([freqs, freqs], axis=-1)           # (S, HEAD_DIM)
    cos = np.tile(np.cos(emb), (1, N_HEADS))                # (S, Q_DIM)
    sin = np.tile(np.sin(emb), (1, N_HEADS))
    return jnp.asarray(cos), jnp.asarray(sin)


def qwen2_fcls_forward(x, params):
    """x: (B, T, INPUT_DIM) -> logits (B, NUM_CLASSES). reduce_ratio=1 path."""
    B, T, C = x.shape
    S = T + 2
    KC = TOKEN_KERNEL * C
    pad = TOKEN_KERNEL // 2

    # Circular pad + time-unfold (tiny XLA glue): turns the Conv1d into one matmul.
    xp = jnp.concatenate([x[:, -pad:, :], x, x[:, :pad, :]], axis=1)
    xu = jnp.concatenate([xp[:, k:k + T, :] for k in range(TOKEN_KERNEL)],
                         axis=-1).astype(MM_DTYPE)          # (B, T, K*C)

    cos, sin = _rope_tables(S)                              # trace-time constants

    kern = functools.partial(_fused_forward_kernel, seq_len=T)
    logits_pad = pl.pallas_call(
        kern,
        out_shape=jax.ShapeDtypeStruct((B, 1, HEAD_PAD), jnp.float32),
        grid=(B,),
        in_specs=[
            pl.BlockSpec((1, T, KC), lambda b: (b, 0, 0)),            # xu
            _full_spec((KC, D_MODEL)),                                # token_w
            _full_spec((1, D_MODEL)),                                 # start_token
            _full_spec((1, D_MODEL)),                                 # stop_token
            _full_spec((S, Q_DIM)),                                   # cos
            _full_spec((S, Q_DIM)),                                   # sin
            _full_spec((N_LAYERS, 1, D_MODEL)),                       # ln1
            _full_spec((N_LAYERS, D_MODEL, PROJ_DIM)),                # wqkv (fused)
            _full_spec((N_LAYERS, 1, PROJ_DIM)),                      # bqkv
            _full_spec((N_LAYERS, Q_DIM, D_MODEL)),                   # wo
            _full_spec((N_LAYERS, 1, D_MODEL)),                       # ln2
            _full_spec((N_LAYERS, D_MODEL, GU_DIM)),                  # wgu
            _full_spec((N_LAYERS, INTERMEDIATE, D_MODEL)),            # wd
            _full_spec((1, D_MODEL)),                                 # final_norm
            _full_spec((D_MODEL, HEAD_PAD)),                          # head_w
            _full_spec((1, HEAD_PAD)),                                # head_b
        ],
        out_specs=pl.BlockSpec((1, 1, HEAD_PAD), lambda b: (b, 0, 0)),
        compiler_params=pltpu.CompilerParams(dimension_semantics=("parallel",)),
    )(xu, params['token_w'], params['start_token'], params['stop_token'],
      cos, sin,
      params['ln1'], params['wqkv'], params['bqkv'], params['wo'],
      params['ln2'], params['wgu'], params['wd'],
      params['final_norm'], params['head_w'], params['head_b'])

    return logits_pad[:, 0, :NUM_CLASSES]


# ---------------- parameter construction ----------------
def _rotate_half_matrix(width):
    """R such that x @ R == rotate_half(x) applied per HEAD_DIM stripe."""
    half = HEAD_DIM // 2
    n_heads = width // HEAD_DIM
    R = np.zeros((width, width), np.float32)
    for h in range(n_heads):
        base = h * HEAD_DIM
        for j in range(half):
            R[base + half + j, base + j] = -1.0   # out[:half] = -x[half:]
            R[base + j, base + half + j] = 1.0    # out[half:] =  x[:half]
    return jnp.asarray(R)


def _expand_kv(w):
    """GQA: duplicate each KV head `rep` times along the output dim (…,KV_DIM)->(…,Q_DIM)."""
    rep = N_HEADS // N_KV_HEADS
    lead = w.shape[:-1]
    wr = w.reshape(*lead, N_KV_HEADS, 1, HEAD_DIM)
    wr = jnp.broadcast_to(wr, (*lead, N_KV_HEADS, rep, HEAD_DIM))
    return wr.reshape(*lead, Q_DIM)


def init_params(key):
    def nrm(k, shape, scale=0.02):
        return scale * jax.random.normal(k, shape, jnp.float32)

    keys = iter(jax.random.split(key, 7 * N_LAYERS + 2))
    R = _rotate_half_matrix(Q_DIM)
    attn_scale = 1.0 / math.sqrt(HEAD_DIM)

    # token conv weight laid out (K*C, D) for the unfolded single-matmul conv
    token_w = nrm(next(keys), (TOKEN_KERNEL * INPUT_DIM, D_MODEL)).astype(MM_DTYPE)

    # classification head padded to 128 lanes (zero columns beyond NUM_CLASSES)
    head_w = jnp.zeros((D_MODEL, HEAD_PAD), jnp.float32)
    head_w = head_w.at[:, :NUM_CLASSES].set(nrm(next(keys), (D_MODEL, NUM_CLASSES)))

    ln1, ln2, wqkv, bqkv, wo, wgu, wd = [], [], [], [], [], [], []
    for _ in range(N_LAYERS):
        wq = nrm(next(keys), (D_MODEL, Q_DIM)) * attn_scale     # fold 1/sqrt(d) into Wq
        wk = nrm(next(keys), (D_MODEL, KV_DIM))
        wv = nrm(next(keys), (D_MODEL, KV_DIM))
        bq = jnp.zeros((1, Q_DIM), jnp.float32) * attn_scale    # Qwen2 q/k/v bias (zero init)
        bk = jnp.zeros((1, KV_DIM), jnp.float32)
        bv = jnp.zeros((1, KV_DIM), jnp.float32)

        wk_e, wv_e = _expand_kv(wk), _expand_kv(wv)             # GQA folded into weights
        bk_e, bv_e = _expand_kv(bk), _expand_kv(bv)
        wq_rot, wk_rot = wq @ R, wk_e @ R                       # rotate-half folded into weights
        bq_rot, bk_rot = bq @ R, bk_e @ R

        ln1.append(jnp.ones((1, D_MODEL), jnp.float32))
        ln2.append(jnp.ones((1, D_MODEL), jnp.float32))
        wqkv.append(jnp.concatenate([wq, wk_e, wv_e, wq_rot, wk_rot],
                                    axis=1).astype(MM_DTYPE))   # (D, PROJ_DIM)
        bqkv.append(jnp.concatenate([bq, bk_e, bv_e, bq_rot, bk_rot], axis=1))
        wo.append(nrm(next(keys), (Q_DIM, D_MODEL)).astype(MM_DTYPE))
        wg = nrm(next(keys), (D_MODEL, INTERMEDIATE))
        wu = nrm(next(keys), (D_MODEL, INTERMEDIATE))
        wgu.append(jnp.concatenate([wg, wu], axis=1).astype(MM_DTYPE))
        wd.append(nrm(next(keys), (INTERMEDIATE, D_MODEL)).astype(MM_DTYPE))

    return {
        'token_w': token_w,
        'start_token': jnp.zeros((1, D_MODEL), jnp.float32),    # torch.zeros init
        'stop_token': jnp.zeros((1, D_MODEL), jnp.float32),
        'ln1': jnp.stack(ln1), 'ln2': jnp.stack(ln2),
        'wqkv': jnp.stack(wqkv), 'bqkv': jnp.stack(bqkv), 'wo': jnp.stack(wo),
        'wgu': jnp.stack(wgu), 'wd': jnp.stack(wd),
        'final_norm': jnp.ones((1, D_MODEL), jnp.float32),
        'head_w': head_w.astype(MM_DTYPE),
        'head_b': jnp.zeros((1, HEAD_PAD), jnp.float32),
    }


if __name__ == "__main__":
    key = jax.random.PRNGKey(0)
    pkey, xkey = jax.random.split(key)
    params = init_params(pkey)

    B, T = 2, 8
    x = jax.random.normal(xkey, (B, T, INPUT_DIM), jnp.float32)

    fwd = jax.jit(qwen2_fcls_forward)
    logits = fwd(x, params)
    jax.block_until_ready(logits)
    assert logits.shape == (B, NUM_CLASSES), logits.shape

    # predict() equivalent
    pre_labels = jnp.argmax(logits, axis=1)
    jax.block_until_ready(pre_labels)

    print("KERNEL_OK")
</pallas_src>

<mosaic_0001>
module attributes {stable_mosaic.version = 11 : i64} {
  func.func @_fused_forward_kernel(%arg0: i32, %arg1: memref<1x8x48xbf16, #tpu.memory_space<vmem>>, %arg2: memref<48x32xbf16, #tpu.memory_space<vmem>>, %arg3: memref<1x32xf32, #tpu.memory_space<vmem>>, %arg4: memref<1x32xf32, #tpu.memory_space<vmem>>, %arg5: memref<10x32xf32, #tpu.memory_space<vmem>>, %arg6: memref<10x32xf32, #tpu.memory_space<vmem>>, %arg7: memref<2x1x32xf32, #tpu.memory_space<vmem>>, %arg8: memref<2x32x160xbf16, #tpu.memory_space<vmem>>, %arg9: memref<2x1x160xf32, #tpu.memory_space<vmem>>, %arg10: memref<2x32x32xbf16, #tpu.memory_space<vmem>>, %arg11: memref<2x1x32xf32, #tpu.memory_space<vmem>>, %arg12: memref<2x32x128xbf16, #tpu.memory_space<vmem>>, %arg13: memref<2x64x32xbf16, #tpu.memory_space<vmem>>, %arg14: memref<1x32xf32, #tpu.memory_space<vmem>>, %arg15: memref<32x128xbf16, #tpu.memory_space<vmem>>, %arg16: memref<1x128xf32, #tpu.memory_space<vmem>>, %arg17: memref<1x1x128xf32, #tpu.memory_space<vmem>>) attributes {dimension_semantics = [#tpu.dimension_semantics<parallel>], iteration_bounds = array<i64: 2>, scalar_prefetch = 0 : i64, scratch_operands = 0 : i64, tpu.core_type = #tpu.core_type<tc>, window_params = [{transform_indices = @transform_0, window_bounds = array<i64: 1, 8, 48>}, {pipeline_mode = #tpu.pipeline_mode<synchronous>, transform_indices = @transform_1, window_bounds = array<i64: 48, 32>}, {pipeline_mode = #tpu.pipeline_mode<synchronous>, transform_indices = @transform_2, window_bounds = array<i64: 1, 32>}, {pipeline_mode = #tpu.pipeline_mode<synchronous>, transform_indices = @transform_3, window_bounds = array<i64: 1, 32>}, {pipeline_mode = #tpu.pipeline_mode<synchronous>, transform_indices = @transform_4, window_bounds = array<i64: 10, 32>}, {pipeline_mode = #tpu.pipeline_mode<synchronous>, transform_indices = @transform_5, window_bounds = array<i64: 10, 32>}, {pipeline_mode = #tpu.pipeline_mode<synchronous>, transform_indices = @transform_6, window_bounds = array<i64: 2, 1, 32>}, {pipeline_mode = #tpu.pipeline_mode<synchronous>, transform_indices = @transform_7, window_bounds = array<i64: 2, 32, 160>}, {pipeline_mode = #tpu.pipeline_mode<synchronous>, transform_indices = @transform_8, window_bounds = array<i64: 2, 1, 160>}, {pipeline_mode = #tpu.pipeline_mode<synchronous>, transform_indices = @transform_9, window_bounds = array<i64: 2, 32, 32>}, {pipeline_mode = #tpu.pipeline_mode<synchronous>, transform_indices = @transform_10, window_bounds = array<i64: 2, 1, 32>}, {pipeline_mode = #tpu.pipeline_mode<synchronous>, transform_indices = @transform_11, window_bounds = array<i64: 2, 32, 128>}, {pipeline_mode = #tpu.pipeline_mode<synchronous>, transform_indices = @transform_12, window_bounds = array<i64: 2, 64, 32>}, {pipeline_mode = #tpu.pipeline_mode<synchronous>, transform_indices = @transform_13, window_bounds = array<i64: 1, 32>}, {pipeline_mode = #tpu.pipeline_mode<synchronous>, transform_indices = @transform_14, window_bounds = array<i64: 32, 128>}, {pipeline_mode = #tpu.pipeline_mode<synchronous>, transform_indices = @transform_15, window_bounds = array<i64: 1, 128>}, {transform_indices = @transform_16, window_bounds = array<i64: 1, 1, 128>}]} {
    %c0 = arith.constant 0 : index
    %c0_0 = arith.constant 0 : index
    %c0_1 = arith.constant 0 : index
    %0 = vector.load %arg1[%c0, %c0_0, %c0_1] : memref<1x8x48xbf16, #tpu.memory_space<vmem>>, vector<1x8x48xbf16>
    %1 = vector.shape_cast %0 : vector<1x8x48xbf16> to vector<8x48xbf16>
    %c0_2 = arith.constant 0 : index
    %c0_3 = arith.constant 0 : index
    %2 = vector.load %arg2[%c0_2, %c0_3] : memref<48x32xbf16, #tpu.memory_space<vmem>>, vector<48x32xbf16>
    %cst = arith.constant dense<0.000000e+00> : vector<8x32xf32>
    %3 = tpu.matmul %1, %2, %cst {dimension_numbers = #tpu.dot_dimension_numbers<[1], [0], [0], [1], [0, 0, 1, 1], [], []>} : vector<8x48xbf16>, vector<48x32xbf16>, vector<8x32xf32> -> vector<8x32xf32>
    %c0_4 = arith.constant 0 : index
    %c0_5 = arith.constant 0 : index
    %4 = vector.load %arg3[%c0_4, %c0_5] : memref<1x32xf32, #tpu.memory_space<vmem>>, vector<1x32xf32>
    %c0_6 = arith.constant 0 : index
    %c0_7 = arith.constant 0 : index
    %5 = vector.load %arg4[%c0_6, %c0_7] : memref<1x32xf32, #tpu.memory_space<vmem>>, vector<1x32xf32>
    %6 = tpu.concatenate %4, %3, %5 in 0 : vector<1x32xf32>, vector<8x32xf32>, vector<1x32xf32> -> vector<10x32xf32>
    %c0_8 = arith.constant 0 : index
    %c0_9 = arith.constant 0 : index
    %7 = vector.load %arg5[%c0_8, %c0_9] : memref<10x32xf32, #tpu.memory_space<vmem>>, vector<10x32xf32>
    %c0_10 = arith.constant 0 : index
    %c0_11 = arith.constant 0 : index
    %8 = vector.load %arg6[%c0_10, %c0_11] : memref<10x32xf32, #tpu.memory_space<vmem>>, vector<10x32xf32>
    %9 = tpu.iota {dimensions = array<i32: 0>} : vector<10x10xi32>
    %10 = tpu.iota {dimensions = array<i32: 1>} : vector<10x10xi32>
    %11 = arith.cmpi sge, %9, %10 : vector<10x10xi32>
    %cst_12 = arith.constant 0.000000e+00 : f32
    %cst_13 = arith.constant -1.000000e+30 : f32
    %12 = vector.broadcast %cst_12 : f32 to vector<10x10xf32>
    %13 = vector.broadcast %cst_13 : f32 to vector<10x10xf32>
    %14 = arith.select %11, %12, %13 : vector<10x10xi1>, vector<10x10xf32>
    %c0_14 = arith.constant 0 : index
    %c0_15 = arith.constant 0 : index
    %c0_16 = arith.constant 0 : index
    %15 = vector.load %arg7[%c0_14, %c0_15, %c0_16] : memref<2x1x32xf32, #tpu.memory_space<vmem>>, vector<1x1x32xf32>
    %16 = vector.shape_cast %15 : vector<1x1x32xf32> to vector<1x32xf32>
    %17 = arith.mulf %6, %6 : vector<10x32xf32>
    %cst_17 = arith.constant dense<0.000000e+00> : vector<10xf32>
    %18 = vector.multi_reduction <add>, %17, %cst_17 [1] : vector<10x32xf32> to vector<10xf32>
    %19 = vector.shape_cast %18 : vector<10xf32> to vector<10x1xf32>
    %cst_18 = arith.constant 3.200000e+01 : f32
    %20 = vector.broadcast %cst_18 : f32 to vector<10x1xf32>
    %21 = arith.divf %19, %20 : vector<10x1xf32>
    %cst_19 = arith.constant 9.99999997E-7 : f32
    %22 = vector.broadcast %cst_19 : f32 to vector<10x1xf32>
    %23 = arith.addf %21, %22 : vector<10x1xf32>
    %24 = math.rsqrt %23 : vector<10x1xf32>
    %25 = vector.broadcast %24 : vector<10x1xf32> to vector<10x32xf32>
    %26 = arith.mulf %6, %25 : vector<10x32xf32>
    %27 = vector.broadcast %16 : vector<1x32xf32> to vector<10x32xf32>
    %28 = arith.mulf %26, %27 : vector<10x32xf32>
    %c0_20 = arith.constant 0 : index
    %c0_21 = arith.constant 0 : index
    %c0_22 = arith.constant 0 : index
    %29 = vector.load %arg8[%c0_20, %c0_21, %c0_22] : memref<2x32x160xbf16, #tpu.memory_space<vmem>>, vector<1x32x160xbf16>
    %30 = vector.shape_cast %29 : vector<1x32x160xbf16> to vector<32x160xbf16>
    %31 = arith.truncf %28 : vector<10x32xf32> to vector<10x32xbf16>
    %cst_23 = arith.constant dense<0.000000e+00> : vector<10x160xf32>
    %32 = tpu.matmul %31, %30, %cst_23 {dimension_numbers = #tpu.dot_dimension_numbers<[1], [0], [0], [1], [0, 0, 1, 1], [], []>} : vector<10x32xbf16>, vector<32x160xbf16>, vector<10x160xf32> -> vector<10x160xf32>
    %c0_24 = arith.constant 0 : index
    %c0_25 = arith.constant 0 : index
    %c0_26 = arith.constant 0 : index
    %33 = vector.load %arg9[%c0_24, %c0_25, %c0_26] : memref<2x1x160xf32, #tpu.memory_space<vmem>>, vector<1x1x160xf32>
    %34 = vector.shape_cast %33 : vector<1x1x160xf32> to vector<1x160xf32>
    %35 = vector.broadcast %34 : vector<1x160xf32> to vector<10x160xf32>
    %36 = arith.addf %32, %35 : vector<10x160xf32>
    %37 = vector.extract_strided_slice %36 {offsets = [0, 0], sizes = [10, 32], strides = [1, 1]} : vector<10x160xf32> to vector<10x32xf32>
    %38 = vector.extract_strided_slice %36 {offsets = [0, 32], sizes = [10, 32], strides = [1, 1]} : vector<10x160xf32> to vector<10x32xf32>
    %39 = vector.extract_strided_slice %36 {offsets = [0, 64], sizes = [10, 32], strides = [1, 1]} : vector<10x160xf32> to vector<10x32xf32>
    %40 = vector.extract_strided_slice %36 {offsets = [0, 96], sizes = [10, 32], strides = [1, 1]} : vector<10x160xf32> to vector<10x32xf32>
    %41 = vector.extract_strided_slice %36 {offsets = [0, 128], sizes = [10, 32], strides = [1, 1]} : vector<10x160xf32> to vector<10x32xf32>
    %42 = arith.mulf %37, %7 : vector<10x32xf32>
    %43 = arith.mulf %40, %8 : vector<10x32xf32>
    %44 = arith.addf %42, %43 : vector<10x32xf32>
    %45 = arith.truncf %44 : vector<10x32xf32> to vector<10x32xbf16>
    %46 = arith.mulf %38, %7 : vector<10x32xf32>
    %47 = arith.mulf %41, %8 : vector<10x32xf32>
    %48 = arith.addf %46, %47 : vector<10x32xf32>
    %49 = arith.truncf %48 : vector<10x32xf32> to vector<10x32xbf16>
    %50 = arith.truncf %39 : vector<10x32xf32> to vector<10x32xbf16>
    %51 = vector.extract_strided_slice %45 {offsets = [0, 0], sizes = [10, 8], strides = [1, 1]} : vector<10x32xbf16> to vector<10x8xbf16>
    %52 = vector.extract_strided_slice %45 {offsets = [0, 8], sizes = [10, 8], strides = [1, 1]} : vector<10x32xbf16> to vector<10x8xbf16>
    %53 = vector.extract_strided_slice %45 {offsets = [0, 16], sizes = [10, 8], strides = [1, 1]} : vector<10x32xbf16> to vector<10x8xbf16>
    %54 = vector.extract_strided_slice %45 {offsets = [0, 24], sizes = [10, 8], strides = [1, 1]} : vector<10x32xbf16> to vector<10x8xbf16>
    %55 = vector.shape_cast %51 : vector<10x8xbf16> to vector<1x10x8xbf16>
    %56 = vector.shape_cast %52 : vector<10x8xbf16> to vector<1x10x8xbf16>
    %57 = vector.shape_cast %53 : vector<10x8xbf16> to vector<1x10x8xbf16>
    %58 = vector.shape_cast %54 : vector<10x8xbf16> to vector<1x10x8xbf16>
    %59 = tpu.concatenate %55, %56, %57, %58 in 0 : vector<1x10x8xbf16>, vector<1x10x8xbf16>, vector<1x10x8xbf16>, vector<1x10x8xbf16> -> vector<4x10x8xbf16>
    %60 = vector.extract_strided_slice %49 {offsets = [0, 0], sizes = [10, 8], strides = [1, 1]} : vector<10x32xbf16> to vector<10x8xbf16>
    %61 = vector.extract_strided_slice %49 {offsets = [0, 8], sizes = [10, 8], strides = [1, 1]} : vector<10x32xbf16> to vector<10x8xbf16>
    %62 = vector.extract_strided_slice %49 {offsets = [0, 16], sizes = [10, 8], strides = [1, 1]} : vector<10x32xbf16> to vector<10x8xbf16>
    %63 = vector.extract_strided_slice %49 {offsets = [0, 24], sizes = [10, 8], strides = [1, 1]} : vector<10x32xbf16> to vector<10x8xbf16>
    %64 = vector.shape_cast %60 : vector<10x8xbf16> to vector<1x10x8xbf16>
    %65 = vector.shape_cast %61 : vector<10x8xbf16> to vector<1x10x8xbf16>
    %66 = vector.shape_cast %62 : vector<10x8xbf16> to vector<1x10x8xbf16>
    %67 = vector.shape_cast %63 : vector<10x8xbf16> to vector<1x10x8xbf16>
    %68 = tpu.concatenate %64, %65, %66, %67 in 0 : vector<1x10x8xbf16>, vector<1x10x8xbf16>, vector<1x10x8xbf16>, vector<1x10x8xbf16> -> vector<4x10x8xbf16>
    %69 = vector.extract_strided_slice %50 {offsets = [0, 0], sizes = [10, 8], strides = [1, 1]} : vector<10x32xbf16> to vector<10x8xbf16>
    %70 = vector.extract_strided_slice %50 {offsets = [0, 8], sizes = [10, 8], strides = [1, 1]} : vector<10x32xbf16> to vector<10x8xbf16>
    %71 = vector.extract_strided_slice %50 {offsets = [0, 16], sizes = [10, 8], strides = [1, 1]} : vector<10x32xbf16> to vector<10x8xbf16>
    %72 = vector.extract_strided_slice %50 {offsets = [0, 24], sizes = [10, 8], strides = [1, 1]} : vector<10x32xbf16> to vector<10x8xbf16>
    %73 = vector.shape_cast %69 : vector<10x8xbf16> to vector<1x10x8xbf16>
    %74 = vector.shape_cast %70 : vector<10x8xbf16> to vector<1x10x8xbf16>
    %75 = vector.shape_cast %71 : vector<10x8xbf16> to vector<1x10x8xbf16>
    %76 = vector.shape_cast %72 : vector<10x8xbf16> to vector<1x10x8xbf16>
    %77 = tpu.concatenate %73, %74, %75, %76 in 0 : vector<1x10x8xbf16>, vector<1x10x8xbf16>, vector<1x10x8xbf16>, vector<1x10x8xbf16> -> vector<4x10x8xbf16>
    "tpu.trace_start"() <{level = 10 : i32, message = "hqd,hkd->hqk"}> : () -> ()
    %cst_27 = arith.constant dense<0.000000e+00> : vector<4x10x10xf32>
    %78 = tpu.matmul %59, %68, %cst_27 {dimension_numbers = #tpu.dot_dimension_numbers<[2], [2], [1], [1], [0, 0, 0, 1, 1, 1], [0], [0]>} : vector<4x10x8xbf16>, vector<4x10x8xbf16>, vector<4x10x10xf32> -> vector<4x10x10xf32>
    "tpu.trace_stop"() : () -> ()
    %79 = vector.shape_cast %14 : vector<10x10xf32> to vector<1x10x10xf32>
    %80 = vector.broadcast %79 : vector<1x10x10xf32> to vector<4x10x10xf32>
    %81 = arith.addf %78, %80 : vector<4x10x10xf32>
    %cst_28 = arith.constant dense<0xFF800000> : vector<4x10xf32>
    %82 = vector.multi_reduction <maximumf>, %81, %cst_28 [2] : vector<4x10x10xf32> to vector<4x10xf32>
    %83 = vector.shape_cast %82 : vector<4x10xf32> to vector<4x10x1xf32>
    %84 = vector.broadcast %83 : vector<4x10x1xf32> to vector<4x10x10xf32>
    %85 = arith.subf %81, %84 : vector<4x10x10xf32>
    %86 = math.exp %85 : vector<4x10x10xf32>
    %cst_29 = arith.constant dense<0.000000e+00> : vector<4x10xf32>
    %87 = vector.multi_reduction <add>, %86, %cst_29 [2] : vector<4x10x10xf32> to vector<4x10xf32>
    %88 = vector.shape_cast %87 : vector<4x10xf32> to vector<4x10x1xf32>
    %89 = tpu.reciprocal %88 {approx = true} : vector<4x10x1xf32> -> vector<4x10x1xf32>
    %90 = vector.broadcast %89 : vector<4x10x1xf32> to vector<4x10x10xf32>
    %91 = arith.mulf %86, %90 : vector<4x10x10xf32>
    %92 = arith.truncf %91 : vector<4x10x10xf32> to vector<4x10x10xbf16>
    "tpu.trace_start"() <{level = 10 : i32, message = "hqk,hkd->hqd"}> : () -> ()
    %cst_30 = arith.constant dense<0.000000e+00> : vector<4x10x8xf32>
    %93 = tpu.matmul %92, %77, %cst_30 {dimension_numbers = #tpu.dot_dimension_numbers<[2], [1], [1], [2], [0, 0, 0, 1, 1, 2], [0], [0]>} : vector<4x10x10xbf16>, vector<4x10x8xbf16>, vector<4x10x8xf32> -> vector<4x10x8xf32>
    "tpu.trace_stop"() : () -> ()
    %94 = vector.extract_strided_slice %93 {offsets = [0, 0, 0], sizes = [1, 10, 8], strides = [1, 1, 1]} : vector<4x10x8xf32> to vector<1x10x8xf32>
    %95 = vector.shape_cast %94 : vector<1x10x8xf32> to vector<10x8xf32>
    %96 = vector.extract_strided_slice %93 {offsets = [1, 0, 0], sizes = [1, 10, 8], strides = [1, 1, 1]} : vector<4x10x8xf32> to vector<1x10x8xf32>
    %97 = vector.shape_cast %96 : vector<1x10x8xf32> to vector<10x8xf32>
    %98 = vector.extract_strided_slice %93 {offsets = [2, 0, 0], sizes = [1, 10, 8], strides = [1, 1, 1]} : vector<4x10x8xf32> to vector<1x10x8xf32>
    %99 = vector.shape_cast %98 : vector<1x10x8xf32> to vector<10x8xf32>
    %100 = vector.extract_strided_slice %93 {offsets = [3, 0, 0], sizes = [1, 10, 8], strides = [1, 1, 1]} : vector<4x10x8xf32> to vector<1x10x8xf32>
    %101 = vector.shape_cast %100 : vector<1x10x8xf32> to vector<10x8xf32>
    %102 = tpu.concatenate %95, %97, %99, %101 in 1 : vector<10x8xf32>, vector<10x8xf32>, vector<10x8xf32>, vector<10x8xf32> -> vector<10x32xf32>
    %c0_31 = arith.constant 0 : index
    %c0_32 = arith.constant 0 : index
    %c0_33 = arith.constant 0 : index
    %103 = vector.load %arg10[%c0_31, %c0_32, %c0_33] : memref<2x32x32xbf16, #tpu.memory_space<vmem>>, vector<1x32x32xbf16>
    %104 = vector.shape_cast %103 : vector<1x32x32xbf16> to vector<32x32xbf16>
    %105 = arith.truncf %102 : vector<10x32xf32> to vector<10x32xbf16>
    %cst_34 = arith.constant dense<0.000000e+00> : vector<10x32xf32>
    %106 = tpu.matmul %105, %104, %cst_34 {dimension_numbers = #tpu.dot_dimension_numbers<[1], [0], [0], [1], [0, 0, 1, 1], [], []>} : vector<10x32xbf16>, vector<32x32xbf16>, vector<10x32xf32> -> vector<10x32xf32>
    %107 = arith.addf %6, %106 : vector<10x32xf32>
    %c0_35 = arith.constant 0 : index
    %c0_36 = arith.constant 0 : index
    %c0_37 = arith.constant 0 : index
    %108 = vector.load %arg11[%c0_35, %c0_36, %c0_37] : memref<2x1x32xf32, #tpu.memory_space<vmem>>, vector<1x1x32xf32>
    %109 = vector.shape_cast %108 : vector<1x1x32xf32> to vector<1x32xf32>
    %110 = arith.mulf %107, %107 : vector<10x32xf32>
    %cst_38 = arith.constant dense<0.000000e+00> : vector<10xf32>
    %111 = vector.multi_reduction <add>, %110, %cst_38 [1] : vector<10x32xf32> to vector<10xf32>
    %112 = vector.shape_cast %111 : vector<10xf32> to vector<10x1xf32>
    %cst_39 = arith.constant 3.200000e+01 : f32
    %113 = vector.broadcast %cst_39 : f32 to vector<10x1xf32>
    %114 = arith.divf %112, %113 : vector<10x1xf32>
    %cst_40 = arith.constant 9.99999997E-7 : f32
    %115 = vector.broadcast %cst_40 : f32 to vector<10x1xf32>
    %116 = arith.addf %114, %115 : vector<10x1xf32>
    %117 = math.rsqrt %116 : vector<10x1xf32>
    %118 = vector.broadcast %117 : vector<10x1xf32> to vector<10x32xf32>
    %119 = arith.mulf %107, %118 : vector<10x32xf32>
    %120 = vector.broadcast %109 : vector<1x32xf32> to vector<10x32xf32>
    %121 = arith.mulf %119, %120 : vector<10x32xf32>
    %c0_41 = arith.constant 0 : index
    %c0_42 = arith.constant 0 : index
    %c0_43 = arith.constant 0 : index
    %122 = vector.load %arg12[%c0_41, %c0_42, %c0_43] : memref<2x32x128xbf16, #tpu.memory_space<vmem>>, vector<1x32x128xbf16>
    %123 = vector.shape_cast %122 : vector<1x32x128xbf16> to vector<32x128xbf16>
    %124 = arith.truncf %121 : vector<10x32xf32> to vector<10x32xbf16>
    %cst_44 = arith.constant dense<0.000000e+00> : vector<10x128xf32>
    %125 = tpu.matmul %124, %123, %cst_44 {dimension_numbers = #tpu.dot_dimension_numbers<[1], [0], [0], [1], [0, 0, 1, 1], [], []>} : vector<10x32xbf16>, vector<32x128xbf16>, vector<10x128xf32> -> vector<10x128xf32>
    %126 = vector.extract_strided_slice %125 {offsets = [0, 0], sizes = [10, 64], strides = [1, 1]} : vector<10x128xf32> to vector<10x64xf32>
    %127 = vector.extract_strided_slice %125 {offsets = [0, 64], sizes = [10, 64], strides = [1, 1]} : vector<10x128xf32> to vector<10x64xf32>
    %128 = arith.negf %126 : vector<10x64xf32>
    %129 = math.exp %128 : vector<10x64xf32>
    %cst_45 = arith.constant 1.000000e+00 : f32
    %130 = vector.broadcast %cst_45 : f32 to vector<10x64xf32>
    %131 = arith.addf %130, %129 : vector<10x64xf32>
    %132 = arith.divf %130, %131 : vector<10x64xf32>
    %133 = arith.mulf %126, %132 : vector<10x64xf32>
    %134 = arith.mulf %133, %127 : vector<10x64xf32>
    %c0_46 = arith.constant 0 : index
    %c0_47 = arith.constant 0 : index
    %c0_48 = arith.constant 0 : index
    %135 = vector.load %arg13[%c0_46, %c0_47, %c0_48] : memref<2x64x32xbf16, #tpu.memory_space<vmem>>, vector<1x64x32xbf16>
    %136 = vector.shape_cast %135 : vector<1x64x32xbf16> to vector<64x32xbf16>
    %137 = arith.truncf %134 : vector<10x64xf32> to vector<10x64xbf16>
    %cst_49 = arith.constant dense<0.000000e+00> : vector<10x32xf32>
    %138 = tpu.matmul %137, %136, %cst_49 {dimension_numbers = #tpu.dot_dimension_numbers<[1], [0], [0], [1], [0, 0, 1, 1], [], []>} : vector<10x64xbf16>, vector<64x32xbf16>, vector<10x32xf32> -> vector<10x32xf32>
    %139 = arith.addf %107, %138 : vector<10x32xf32>
    %c1 = arith.constant 1 : index
    %c0_50 = arith.constant 0 : index
    %c0_51 = arith.constant 0 : index
    %140 = vector.load %arg7[%c1, %c0_50, %c0_51] : memref<2x1x32xf32, #tpu.memory_space<vmem>>, vector<1x1x32xf32>
    %141 = vector.shape_cast %140 : vector<1x1x32xf32> to vector<1x32xf32>
    %142 = arith.mulf %139, %139 : vector<10x32xf32>
    %cst_52 = arith.constant dense<0.000000e+00> : vector<10xf32>
    %143 = vector.multi_reduction <add>, %142, %cst_52 [1] : vector<10x32xf32> to vector<10xf32>
    %144 = vector.shape_cast %143 : vector<10xf32> to vector<10x1xf32>
    %cst_53 = arith.constant 3.200000e+01 : f32
    %145 = vector.broadcast %cst_53 : f32 to vector<10x1xf32>
    %146 = arith.divf %144, %145 : vector<10x1xf32>
    %cst_54 = arith.constant 9.99999997E-7 : f32
    %147 = vector.broadcast %cst_54 : f32 to vector<10x1xf32>
    %148 = arith.addf %146, %147 : vector<10x1xf32>
    %149 = math.rsqrt %148 : vector<10x1xf32>
    %150 = vector.broadcast %149 : vector<10x1xf32> to vector<10x32xf32>
    %151 = arith.mulf %139, %150 : vector<10x32xf32>
    %152 = vector.broadcast %141 : vector<1x32xf32> to vector<10x32xf32>
    %153 = arith.mulf %151, %152 : vector<10x32xf32>
    %c1_55 = arith.constant 1 : index
    %c0_56 = arith.constant 0 : index
    %c0_57 = arith.constant 0 : index
    %154 = vector.load %arg8[%c1_55, %c0_56, %c0_57] : memref<2x32x160xbf16, #tpu.memory_space<vmem>>, vector<1x32x160xbf16>
    %155 = vector.shape_cast %154 : vector<1x32x160xbf16> to vector<32x160xbf16>
    %156 = arith.truncf %153 : vector<10x32xf32> to vector<10x32xbf16>
    %cst_58 = arith.constant dense<0.000000e+00> : vector<10x160xf32>
    %157 = tpu.matmul %156, %155, %cst_58 {dimension_numbers = #tpu.dot_dimension_numbers<[1], [0], [0], [1], [0, 0, 1, 1], [], []>} : vector<10x32xbf16>, vector<32x160xbf16>, vector<10x160xf32> -> vector<10x160xf32>
    %c1_59 = arith.constant 1 : index
    %c0_60 = arith.constant 0 : index
    %c0_61 = arith.constant 0 : index
    %158 = vector.load %arg9[%c1_59, %c0_60, %c0_61] : memref<2x1x160xf32, #tpu.memory_space<vmem>>, vector<1x1x160xf32>
    %159 = vector.shape_cast %158 : vector<1x1x160xf32> to vector<1x160xf32>
    %160 = vector.broadcast %159 : vector<1x160xf32> to vector<10x160xf32>
    %161 = arith.addf %157, %160 : vector<10x160xf32>
    %162 = vector.extract_strided_slice %161 {offsets = [0, 0], sizes = [10, 32], strides = [1, 1]} : vector<10x160xf32> to vector<10x32xf32>
    %163 = vector.extract_strided_slice %161 {offsets = [0, 32], sizes = [10, 32], strides = [1, 1]} : vector<10x160xf32> to vector<10x32xf32>
    %164 = vector.extract_strided_slice %161 {offsets = [0, 64], sizes = [10, 32], strides = [1, 1]} : vector<10x160xf32> to vector<10x32xf32>
    %165 = vector.extract_strided_slice %161 {offsets = [0, 96], sizes = [10, 32], strides = [1, 1]} : vector<10x160xf32> to vector<10x32xf32>
    %166 = vector.extract_strided_slice %161 {offsets = [0, 128], sizes = [10, 32], strides = [1, 1]} : vector<10x160xf32> to vector<10x32xf32>
    %167 = arith.mulf %162, %7 : vector<10x32xf32>
    %168 = arith.mulf %165, %8 : vector<10x32xf32>
    %169 = arith.addf %167, %168 : vector<10x32xf32>
    %170 = arith.truncf %169 : vector<10x32xf32> to vector<10x32xbf16>
    %171 = arith.mulf %163, %7 : vector<10x32xf32>
    %172 = arith.mulf %166, %8 : vector<10x32xf32>
    %173 = arith.addf %171, %172 : vector<10x32xf32>
    %174 = arith.truncf %173 : vector<10x32xf32> to vector<10x32xbf16>
    %175 = arith.truncf %164 : vector<10x32xf32> to vector<10x32xbf16>
    %176 = vector.extract_strided_slice %170 {offsets = [0, 0], sizes = [10, 8], strides = [1, 1]} : vector<10x32xbf16> to vector<10x8xbf16>
    %177 = vector.extract_strided_slice %170 {offsets = [0, 8], sizes = [10, 8], strides = [1, 1]} : vector<10x32xbf16> to vector<10x8xbf16>
    %178 = vector.extract_strided_slice %170 {offsets = [0, 16], sizes = [10, 8], strides = [1, 1]} : vector<10x32xbf16> to vector<10x8xbf16>
    %179 = vector.extract_strided_slice %170 {offsets = [0, 24], sizes = [10, 8], strides = [1, 1]} : vector<10x32xbf16> to vector<10x8xbf16>
    %180 = vector.shape_cast %176 : vector<10x8xbf16> to vector<1x10x8xbf16>
    %181 = vector.shape_cast %177 : vector<10x8xbf16> to vector<1x10x8xbf16>
    %182 = vector.shape_cast %178 : vector<10x8xbf16> to vector<1x10x8xbf16>
    %183 = vector.shape_cast %179 : vector<10x8xbf16> to vector<1x10x8xbf16>
    %184 = tpu.concatenate %180, %181, %182, %183 in 0 : vector<1x10x8xbf16>, vector<1x10x8xbf16>, vector<1x10x8xbf16>, vector<1x10x8xbf16> -> vector<4x10x8xbf16>
    %185 = vector.extract_strided_slice %174 {offsets = [0, 0], sizes = [10, 8], strides = [1, 1]} : vector<10x32xbf16> to vector<10x8xbf16>
    %186 = vector.extract_strided_slice %174 {offsets = [0, 8], sizes = [10, 8], strides = [1, 1]} : vector<10x32xbf16> to vector<10x8xbf16>
    %187 = vector.extract_strided_slice %174 {offsets = [0, 16], sizes = [10, 8], strides = [1, 1]} : vector<10x32xbf16> to vector<10x8xbf16>
    %188 = vector.extract_strided_slice %174 {offsets = [0, 24], sizes = [10, 8], strides = [1, 1]} : vector<10x32xbf16> to vector<10x8xbf16>
    %189 = vector.shape_cast %185 : vector<10x8xbf16> to vector<1x10x8xbf16>
    %190 = vector.shape_cast %186 : vector<10x8xbf16> to vector<1x10x8xbf16>
    %191 = vector.shape_cast %187 : vector<10x8xbf16> to vector<1x10x8xbf16>
    %192 = vector.shape_cast %188 : vector<10x8xbf16> to vector<1x10x8xbf16>
    %193 = tpu.concatenate %189, %190, %191, %192 in 0 : vector<1x10x8xbf16>, vector<1x10x8xbf16>, vector<1x10x8xbf16>, vector<1x10x8xbf16> -> vector<4x10x8xbf16>
    %194 = vector.extract_strided_slice %175 {offsets = [0, 0], sizes = [10, 8], strides = [1, 1]} : vector<10x32xbf16> to vector<10x8xbf16>
    %195 = vector.extract_strided_slice %175 {offsets = [0, 8], sizes = [10, 8], strides = [1, 1]} : vector<10x32xbf16> to vector<10x8xbf16>
    %196 = vector.extract_strided_slice %175 {offsets = [0, 16], sizes = [10, 8], strides = [1, 1]} : vector<10x32xbf16> to vector<10x8xbf16>
    %197 = vector.extract_strided_slice %175 {offsets = [0, 24], sizes = [10, 8], strides = [1, 1]} : vector<10x32xbf16> to vector<10x8xbf16>
    %198 = vector.shape_cast %194 : vector<10x8xbf16> to vector<1x10x8xbf16>
    %199 = vector.shape_cast %195 : vector<10x8xbf16> to vector<1x10x8xbf16>
    %200 = vector.shape_cast %196 : vector<10x8xbf16> to vector<1x10x8xbf16>
    %201 = vector.shape_cast %197 : vector<10x8xbf16> to vector<1x10x8xbf16>
    %202 = tpu.concatenate %198, %199, %200, %201 in 0 : vector<1x10x8xbf16>, vector<1x10x8xbf16>, vector<1x10x8xbf16>, vector<1x10x8xbf16> -> vector<4x10x8xbf16>
    "tpu.trace_start"() <{level = 10 : i32, message = "hqd,hkd->hqk"}> : () -> ()
    %cst_62 = arith.constant dense<0.000000e+00> : vector<4x10x10xf32>
    %203 = tpu.matmul %184, %193, %cst_62 {dimension_numbers = #tpu.dot_dimension_numbers<[2], [2], [1], [1], [0, 0, 0, 1, 1, 1], [0], [0]>} : vector<4x10x8xbf16>, vector<4x10x8xbf16>, vector<4x10x10xf32> -> vector<4x10x10xf32>
    "tpu.trace_stop"() : () -> ()
    %204 = vector.shape_cast %14 : vector<10x10xf32> to vector<1x10x10xf32>
    %205 = vector.broadcast %204 : vector<1x10x10xf32> to vector<4x10x10xf32>
    %206 = arith.addf %203, %205 : vector<4x10x10xf32>
    %cst_63 = arith.constant dense<0xFF800000> : vector<4x10xf32>
    %207 = vector.multi_reduction <maximumf>, %206, %cst_63 [2] : vector<4x10x10xf32> to vector<4x10xf32>
    %208 = vector.shape_cast %207 : vector<4x10xf32> to vector<4x10x1xf32>
    %209 = vector.broadcast %208 : vector<4x10x1xf32> to vector<4x10x10xf32>
    %210 = arith.subf %206, %209 : vector<4x10x10xf32>
    %211 = math.exp %210 : vector<4x10x10xf32>
    %cst_64 = arith.constant dense<0.000000e+00> : vector<4x10xf32>
    %212 = vector.multi_reduction <add>, %211, %cst_64 [2] : vector<4x10x10xf32> to vector<4x10xf32>
    %213 = vector.shape_cast %212 : vector<4x10xf32> to vector<4x10x1xf32>
    %214 = tpu.reciprocal %213 {approx = true} : vector<4x10x1xf32> -> vector<4x10x1xf32>
    %215 = vector.broadcast %214 : vector<4x10x1xf32> to vector<4x10x10xf32>
    %216 = arith.mulf %211, %215 : vector<4x10x10xf32>
    %217 = arith.truncf %216 : vector<4x10x10xf32> to vector<4x10x10xbf16>
    "tpu.trace_start"() <{level = 10 : i32, message = "hqk,hkd->hqd"}> : () -> ()
    %cst_65 = arith.constant dense<0.000000e+00> : vector<4x10x8xf32>
    %218 = tpu.matmul %217, %202, %cst_65 {dimension_numbers = #tpu.dot_dimension_numbers<[2], [1], [1], [2], [0, 0, 0, 1, 1, 2], [0], [0]>} : vector<4x10x10xbf16>, vector<4x10x8xbf16>, vector<4x10x8xf32> -> vector<4x10x8xf32>
    "tpu.trace_stop"() : () -> ()
    %219 = vector.extract_strided_slice %218 {offsets = [0, 0, 0], sizes = [1, 10, 8], strides = [1, 1, 1]} : vector<4x10x8xf32> to vector<1x10x8xf32>
    %220 = vector.shape_cast %219 : vector<1x10x8xf32> to vector<10x8xf32>
    %221 = vector.extract_strided_slice %218 {offsets = [1, 0, 0], sizes = [1, 10, 8], strides = [1, 1, 1]} : vector<4x10x8xf32> to vector<1x10x8xf32>
    %222 = vector.shape_cast %221 : vector<1x10x8xf32> to vector<10x8xf32>
    %223 = vector.extract_strided_slice %218 {offsets = [2, 0, 0], sizes = [1, 10, 8], strides = [1, 1, 1]} : vector<4x10x8xf32> to vector<1x10x8xf32>
    %224 = vector.shape_cast %223 : vector<1x10x8xf32> to vector<10x8xf32>
    %225 = vector.extract_strided_slice %218 {offsets = [3, 0, 0], sizes = [1, 10, 8], strides = [1, 1, 1]} : vector<4x10x8xf32> to vector<1x10x8xf32>
    %226 = vector.shape_cast %225 : vector<1x10x8xf32> to vector<10x8xf32>
    %227 = tpu.concatenate %220, %222, %224, %226 in 1 : vector<10x8xf32>, vector<10x8xf32>, vector<10x8xf32>, vector<10x8xf32> -> vector<10x32xf32>
    %c1_66 = arith.constant 1 : index
    %c0_67 = arith.constant 0 : index
    %c0_68 = arith.constant 0 : index
    %228 = vector.load %arg10[%c1_66, %c0_67, %c0_68] : memref<2x32x32xbf16, #tpu.memory_space<vmem>>, vector<1x32x32xbf16>
    %229 = vector.shape_cast %228 : vector<1x32x32xbf16> to vector<32x32xbf16>
    %230 = arith.truncf %227 : vector<10x32xf32> to vector<10x32xbf16>
    %cst_69 = arith.constant dense<0.000000e+00> : vector<10x32xf32>
    %231 = tpu.matmul %230, %229, %cst_69 {dimension_numbers = #tpu.dot_dimension_numbers<[1], [0], [0], [1], [0, 0, 1, 1], [], []>} : vector<10x32xbf16>, vector<32x32xbf16>, vector<10x32xf32> -> vector<10x32xf32>
    %232 = arith.addf %139, %231 : vector<10x32xf32>
    %c1_70 = arith.constant 1 : index
    %c0_71 = arith.constant 0 : index
    %c0_72 = arith.constant 0 : index
    %233 = vector.load %arg11[%c1_70, %c0_71, %c0_72] : memref<2x1x32xf32, #tpu.memory_space<vmem>>, vector<1x1x32xf32>
    %234 = vector.shape_cast %233 : vector<1x1x32xf32> to vector<1x32xf32>
    %235 = arith.mulf %232, %232 : vector<10x32xf32>
    %cst_73 = arith.constant dense<0.000000e+00> : vector<10xf32>
    %236 = vector.multi_reduction <add>, %235, %cst_73 [1] : vector<10x32xf32> to vector<10xf32>
    %237 = vector.shape_cast %236 : vector<10xf32> to vector<10x1xf32>
    %cst_74 = arith.constant 3.200000e+01 : f32
    %238 = vector.broadcast %cst_74 : f32 to vector<10x1xf32>
    %239 = arith.divf %237, %238 : vector<10x1xf32>
    %cst_75 = arith.constant 9.99999997E-7 : f32
    %240 = vector.broadcast %cst_75 : f32 to vector<10x1xf32>
    %241 = arith.addf %239, %240 : vector<10x1xf32>
    %242 = math.rsqrt %241 : vector<10x1xf32>
    %243 = vector.broadcast %242 : vector<10x1xf32> to vector<10x32xf32>
    %244 = arith.mulf %232, %243 : vector<10x32xf32>
    %245 = vector.broadcast %234 : vector<1x32xf32> to vector<10x32xf32>
    %246 = arith.mulf %244, %245 : vector<10x32xf32>
    %c1_76 = arith.constant 1 : index
    %c0_77 = arith.constant 0 : index
    %c0_78 = arith.constant 0 : index
    %247 = vector.load %arg12[%c1_76, %c0_77, %c0_78] : memref<2x32x128xbf16, #tpu.memory_space<vmem>>, vector<1x32x128xbf16>
    %248 = vector.shape_cast %247 : vector<1x32x128xbf16> to vector<32x128xbf16>
    %249 = arith.truncf %246 : vector<10x32xf32> to vector<10x32xbf16>
    %cst_79 = arith.constant dense<0.000000e+00> : vector<10x128xf32>
    %250 = tpu.matmul %249, %248, %cst_79 {dimension_numbers = #tpu.dot_dimension_numbers<[1], [0], [0], [1], [0, 0, 1, 1], [], []>} : vector<10x32xbf16>, vector<32x128xbf16>, vector<10x128xf32> -> vector<10x128xf32>
    %251 = vector.extract_strided_slice %250 {offsets = [0, 0], sizes = [10, 64], strides = [1, 1]} : vector<10x128xf32> to vector<10x64xf32>
    %252 = vector.extract_strided_slice %250 {offsets = [0, 64], sizes = [10, 64], strides = [1, 1]} : vector<10x128xf32> to vector<10x64xf32>
    %253 = arith.negf %251 : vector<10x64xf32>
    %254 = math.exp %253 : vector<10x64xf32>
    %cst_80 = arith.constant 1.000000e+00 : f32
    %255 = vector.broadcast %cst_80 : f32 to vector<10x64xf32>
    %256 = arith.addf %255, %254 : vector<10x64xf32>
    %257 = arith.divf %255, %256 : vector<10x64xf32>
    %258 = arith.mulf %251, %257 : vector<10x64xf32>
    %259 = arith.mulf %258, %252 : vector<10x64xf32>
    %c1_81 = arith.constant 1 : index
    %c0_82 = arith.constant 0 : index
    %c0_83 = arith.constant 0 : index
    %260 = vector.load %arg13[%c1_81, %c0_82, %c0_83] : memref<2x64x32xbf16, #tpu.memory_space<vmem>>, vector<1x64x32xbf16>
    %261 = vector.shape_cast %260 : vector<1x64x32xbf16> to vector<64x32xbf16>
    %262 = arith.truncf %259 : vector<10x64xf32> to vector<10x64xbf16>
    %cst_84 = arith.constant dense<0.000000e+00> : vector<10x32xf32>
    %263 = tpu.matmul %262, %261, %cst_84 {dimension_numbers = #tpu.dot_dimension_numbers<[1], [0], [0], [1], [0, 0, 1, 1], [], []>} : vector<10x64xbf16>, vector<64x32xbf16>, vector<10x32xf32> -> vector<10x32xf32>
    %264 = arith.addf %232, %263 : vector<10x32xf32>
    %265 = vector.extract_strided_slice %264 {offsets = [9, 0], sizes = [1, 32], strides = [1, 1]} : vector<10x32xf32> to vector<1x32xf32>
    %c0_85 = arith.constant 0 : index
    %c0_86 = arith.constant 0 : index
    %266 = vector.load %arg14[%c0_85, %c0_86] : memref<1x32xf32, #tpu.memory_space<vmem>>, vector<1x32xf32>
    %267 = arith.mulf %265, %265 : vector<1x32xf32>
    %cst_87 = arith.constant dense<0.000000e+00> : vector<1xf32>
    %268 = vector.multi_reduction <add>, %267, %cst_87 [1] : vector<1x32xf32> to vector<1xf32>
    %269 = vector.shape_cast %268 : vector<1xf32> to vector<1x1xf32>
    %cst_88 = arith.constant 3.200000e+01 : f32
    %270 = vector.broadcast %cst_88 : f32 to vector<1x1xf32>
    %271 = arith.divf %269, %270 : vector<1x1xf32>
    %cst_89 = arith.constant 9.99999997E-7 : f32
    %272 = vector.broadcast %cst_89 : f32 to vector<1x1xf32>
    %273 = arith.addf %271, %272 : vector<1x1xf32>
    %274 = math.rsqrt %273 : vector<1x1xf32>
    %275 = vector.broadcast %274 : vector<1x1xf32> to vector<1x32xf32>
    %276 = arith.mulf %265, %275 : vector<1x32xf32>
    %277 = arith.mulf %276, %266 : vector<1x32xf32>
    %c0_90 = arith.constant 0 : index
    %c0_91 = arith.constant 0 : index
    %278 = vector.load %arg15[%c0_90, %c0_91] : memref<32x128xbf16, #tpu.memory_space<vmem>>, vector<32x128xbf16>
    %279 = arith.truncf %277 : vector<1x32xf32> to vector<1x32xbf16>
    %cst_92 = arith.constant dense<0.000000e+00> : vector<1x128xf32>
    %280 = tpu.matmul %279, %278, %cst_92 {dimension_numbers = #tpu.dot_dimension_numbers<[1], [0], [0], [1], [0, 0, 1, 1], [], []>} : vector<1x32xbf16>, vector<32x128xbf16>, vector<1x128xf32> -> vector<1x128xf32>
    %c0_93 = arith.constant 0 : index
    %c0_94 = arith.constant 0 : index
    %281 = vector.load %arg16[%c0_93, %c0_94] : memref<1x128xf32, #tpu.memory_space<vmem>>, vector<1x128xf32>
    %282 = arith.addf %280, %281 : vector<1x128xf32>
    %c0_95 = arith.constant 0 : index
    %c0_96 = arith.constant 0 : index
    %c0_97 = arith.constant 0 : index
    %283 = vector.load %arg17[%c0_95, %c0_96, %c0_97] : memref<1x1x128xf32, #tpu.memory_space<vmem>>, vector<1x1x128xf32>
    %284 = vector.shape_cast %283 : vector<1x1x128xf32> to vector<1x128xf32>
    %285 = vector.shape_cast %282 : vector<1x128xf32> to vector<1x1x128xf32>
    tpu.vector_store %arg17[%c0_95, %c0_96, %c0_97], %285 {strides = array<i32>} : memref<1x1x128xf32, #tpu.memory_space<vmem>>, vector<1x1x128xf32>,
    return
  }
  func.func @transform_0(%arg0: i32) -> (i32, i32, i32) {
    %c0_i32 = arith.constant 0 : i32
    %c0_i32_0 = arith.constant 0 : i32
    %c0_i32_1 = arith.constant 0 : i32
    return %arg0, %c0_i32, %c0_i32_0 : i32, i32, i32
  }
  func.func @transform_1(%arg0: i32) -> (i32, i32) {
    %c0_i32 = arith.constant 0 : i32
    %c0_i32_0 = arith.constant 0 : i32
    %c0_i32_1 = arith.constant 0 : i32
    return %c0_i32, %c0_i32_0 : i32, i32
  }
  func.func @transform_2(%arg0: i32) -> (i32, i32) {
    %c0_i32 = arith.constant 0 : i32
    %c0_i32_0 = arith.constant 0 : i32
    %c0_i32_1 = arith.constant 0 : i32
    return %c0_i32, %c0_i32_0 : i32, i32
  }
  func.func @transform_3(%arg0: i32) -> (i32, i32) {
    %c0_i32 = arith.constant 0 : i32
    %c0_i32_0 = arith.constant 0 : i32
    %c0_i32_1 = arith.constant 0 : i32
    return %c0_i32, %c0_i32_0 : i32, i32
  }
  func.func @transform_4(%arg0: i32) -> (i32, i32) {
    %c0_i32 = arith.constant 0 : i32
    %c0_i32_0 = arith.constant 0 : i32
    %c0_i32_1 = arith.constant 0 : i32
    return %c0_i32, %c0_i32_0 : i32, i32
  }
  func.func @transform_5(%arg0: i32) -> (i32, i32) {
    %c0_i32 = arith.constant 0 : i32
    %c0_i32_0 = arith.constant 0 : i32
    %c0_i32_1 = arith.constant 0 : i32
    return %c0_i32, %c0_i32_0 : i32, i32
  }
  func.func @transform_6(%arg0: i32) -> (i32, i32, i32) {
    %c0_i32 = arith.constant 0 : i32
    %c0_i32_0 = arith.constant 0 : i32
    %c0_i32_1 = arith.constant 0 : i32
    %c0_i32_2 = arith.constant 0 : i32
    return %c0_i32, %c0_i32_0, %c0_i32_1 : i32, i32, i32
  }
  func.func @transform_7(%arg0: i32) -> (i32, i32, i32) {
    %c0_i32 = arith.constant 0 : i32
    %c0_i32_0 = arith.constant 0 : i32
    %c0_i32_1 = arith.constant 0 : i32
    %c0_i32_2 = arith.constant 0 : i32
    return %c0_i32, %c0_i32_0, %c0_i32_1 : i32, i32, i32
  }
  func.func @transform_8(%arg0: i32) -> (i32, i32, i32) {
    %c0_i32 = arith.constant 0 : i32
    %c0_i32_0 = arith.constant 0 : i32
    %c0_i32_1 = arith.constant 0 : i32
    %c0_i32_2 = arith.constant 0 : i32
    return %c0_i32, %c0_i32_0, %c0_i32_1 : i32, i32, i32
  }
  func.func @transform_9(%arg0: i32) -> (i32, i32, i32) {
    %c0_i32 = arith.constant 0 : i32
    %c0_i32_0 = arith.constant 0 : i32
    %c0_i32_1 = arith.constant 0 : i32
    %c0_i32_2 = arith.constant 0 : i32
    return %c0_i32, %c0_i32_0, %c0_i32_1 : i32, i32, i32
  }
  func.func @transform_10(%arg0: i32) -> (i32, i32, i32) {
    %c0_i32 = arith.constant 0 : i32
    %c0_i32_0 = arith.constant 0 : i32
    %c0_i32_1 = arith.constant 0 : i32
    %c0_i32_2 = arith.constant 0 : i32
    return %c0_i32, %c0_i32_0, %c0_i32_1 : i32, i32, i32
  }
  func.func @transform_11(%arg0: i32) -> (i32, i32, i32) {
    %c0_i32 = arith.constant 0 : i32
    %c0_i32_0 = arith.constant 0 : i32
    %c0_i32_1 = arith.constant 0 : i32
    %c0_i32_2 = arith.constant 0 : i32
    return %c0_i32, %c0_i32_0, %c0_i32_1 : i32, i32, i32
  }
  func.func @transform_12(%arg0: i32) -> (i32, i32, i32) {
    %c0_i32 = arith.constant 0 : i32
    %c0_i32_0 = arith.constant 0 : i32
    %c0_i32_1 = arith.constant 0 : i32
    %c0_i32_2 = arith.constant 0 : i32
    return %c0_i32, %c0_i32_0, %c0_i32_1 : i32, i32, i32
  }
  func.func @transform_13(%arg0: i32) -> (i32, i32) {
    %c0_i32 = arith.constant 0 : i32
    %c0_i32_0 = arith.constant 0 : i32
    %c0_i32_1 = arith.constant 0 : i32
    return %c0_i32, %c0_i32_0 : i32, i32
  }
  func.func @transform_14(%arg0: i32) -> (i32, i32) {
    %c0_i32 = arith.constant 0 : i32
    %c0_i32_0 = arith.constant 0 : i32
    %c0_i32_1 = arith.constant 0 : i32
    return %c0_i32, %c0_i32_0 : i32, i32
  }
  func.func @transform_15(%arg0: i32) -> (i32, i32) {
    %c0_i32 = arith.constant 0 : i32
    %c0_i32_0 = arith.constant 0 : i32
    %c0_i32_1 = arith.constant 0 : i32
    return %c0_i32, %c0_i32_0 : i32, i32
  }
  func.func @transform_16(%arg0: i32) -> (i32, i32, i32) {
    %c0_i32 = arith.constant 0 : i32
    %c0_i32_0 = arith.constant 0 : i32
    %c0_i32_1 = arith.constant 0 : i32
    return %arg0, %c0_i32, %c0_i32_0 : i32, i32, i32
  }
}

</mosaic_0001>

<llo_original>
// kernel: qwen2_fcls_forward.1
$region0: #{qwen2_fcls_forward.1}
  #allocation0 [shape = 'u32[]', space=smem, size = 0x4, offset = 0x4, fixed_abs, tag = 'smem constant byte address 0x4 - core index']
  #allocation1 [shape = 'u32[72,128]{1,0:T(1,128)}', space=vmem, size = 0x9000, scoped, tag = 'internal scratch']
  %s0 = inlined_call_operand.vmem [shape: bf16[2,8,48], index: 0, kind: input, shape index: {}]
  %s1 = inlined_call_operand.vmem [shape: bf16[48,32], index: 1, kind: input, shape index: {}]
  %s2 = inlined_call_operand.vmem [shape: f32[1,32], index: 2, kind: input, shape index: {}]
  %s3 = inlined_call_operand.hbm [shape: f32[1,32], index: 3, kind: input, shape index: {}]
  %s4 = inlined_call_operand.hbm [shape: f32[10,32], index: 4, kind: input, shape index: {}]
  %s5 = inlined_call_operand.vmem [shape: f32[10,32], index: 5, kind: input, shape index: {}]
  %s6 = inlined_call_operand.vmem [shape: f32[2,1,32], index: 6, kind: input, shape index: {}]
  %s7 = inlined_call_operand.vmem [shape: bf16[2,32,160], index: 7, kind: input, shape index: {}]
  %s8 = inlined_call_operand.vmem [shape: f32[2,1,160], index: 8, kind: input, shape index: {}]
  %s9 = inlined_call_operand.vmem [shape: bf16[2,32,32], index: 9, kind: input, shape index: {}]
  %s10 = inlined_call_operand.vmem [shape: f32[2,1,32], index: 10, kind: input, shape index: {}]
  %s11 = inlined_call_operand.vmem [shape: bf16[2,32,128], index: 11, kind: input, shape index: {}]
  %s12 = inlined_call_operand.vmem [shape: bf16[2,64,32], index: 12, kind: input, shape index: {}]
  %s13 = inlined_call_operand.hbm [shape: f32[1,32], index: 13, kind: input, shape index: {}]
  %s14 = inlined_call_operand.hbm [shape: bf16[32,128], index: 14, kind: input, shape index: {}]
  %s15 = inlined_call_operand.hbm [shape: f32[1,128], index: 15, kind: input, shape index: {}]
  %s16 = inlined_call_operand.hbm [shape: f32[2,1,128], index: 16, kind: output, shape index: {}]
  %s17 = sld [smem:[#allocation0]]
  $region117: #{qwen2_fcls_forward.1} parent=0
    _
  %s19 = ssub.s32 1, %s17
  %s20 = scalar_select 0, %s19, %s17
  $region1: #{qwen2_fcls_forward.1} parent=0
    #allocation2 [shape = 'u8[512]{0}', space=vmem, size = 0x400, scoped, tag = 'input window, operand 3, single buffered']
    #allocation3 [shape = 's32[2]{0}', space=sflag, size = 0x8, scoped, tag = 'scoped memory for qwen2_fcls_forward.1']
    #allocation4 [shape = 's32[2]{0}', space=sflag, size = 0x8, scoped, tag = 'scoped memory for qwen2_fcls_forward.1']
    #allocation5 [shape = 'u8[8192]{0}', space=vmem, size = 0x2000, scoped, tag = 'input window, operand 4, single buffered']
    #allocation6 [shape = 's32[1]{0}', space=sflag, size = 0x4, scoped, tag = 'scoped memory for qwen2_fcls_forward.1']
    #allocation7 [shape = 'u8[512]{0}', space=vmem, size = 0x400, scoped, tag = 'input window, operand 13, single buffered']
    #allocation8 [shape = 'u8[8192]{0}', space=vmem, size = 0x2000, scoped, tag = 'input window, operand 14, single buffered']
    #allocation9 [shape = 's32[1]{0}', space=sflag, size = 0x4, scoped, tag = 'scoped memory for qwen2_fcls_forward.1']
    #allocation10 [shape = 'u8[512]{0}', space=vmem, size = 0x400, scoped, tag = 'input window, operand 15, single buffered']
    #allocation11 [shape = 'u8[1024]{0}', space=vmem, size = 0x400, scoped, tag = 'output window, operand 0']
    %21 = vsyncpa [#allocation3], 0
    %22 = vsyncpa [#allocation6], 0
    %23 = vsyncpa [#allocation9], 0
    %24 = vsyncpa [#allocation4], 0
    %s25 = scalar_lea.sflag [#allocation4], 1
    %26 = vsyncpa %s25, 0
    loop: start=0, step=1, limit=4
    $region2: #{qwen2_fcls_forward.1} parent=1 // loop_pre_header
      _
    $region3: #{qwen2_fcls_forward.1} parent=1 // loop_header
      %s28 = sphi 0, %s32
      %p29 = scmp.ge.s32.totalorder %s28, 4
      %s38 = sphi 0, %s40
      %s41 = sphi 0, %s38
      %s42 = sphi 0, %s41
      %s58 = sphi 0, %s42
      %s62 = sphi 0, %s62
      %s64 = sphi 0, %s62
      %s65 = sphi 0, %s64
      %s79 = sphi 0, %s65
      %s83 = sphi 0, %s83
      %s85 = sphi 0, %s83
      %s86 = sphi 0, %s85
      %s100 = sphi 0, %s86
      %s104 = sphi 0, %s104
      %s106 = sphi 0, %s104
      %s107 = sphi 0, %s106
      %s121 = sphi 0, %s107
      %s125 = sphi 0, %s125
      %s127 = sphi 0, %s125
      %s128 = sphi 0, %s127
      %s142 = sphi 0, %s128
      %s146 = sphi 0, %s146
      %s148 = sphi 0, %s146
      %s149 = sphi 0, %s148
      %s163 = sphi 0, %s149
      %s167 = sphi 0, %s167
      %s169 = sphi 0, %s167
      %s170 = sphi 0, %s169
      %s184 = sphi 0, %s170
      %s188 = sphi 0, %s188
      %s190 = sphi 0, %s188
      %s191 = sphi 0, %s190
      %s205 = sphi 0, %s191
      %s209 = sphi 0, %s209
      %s211 = sphi 0, %s209
      %s212 = sphi 0, %s211
      %s226 = sphi 0, %s212
      %s230 = sphi 0, %s230
      %s232 = sphi 0, %s230
      %s233 = sphi 0, %s232
      %s247 = sphi 0, %s233
      %s251 = sphi 0, %s251
      %s253 = sphi 0, %s251
      %s254 = sphi 0, %s253
      %s268 = sphi 0, %s254
      %s272 = sphi 0, %s272
      %s274 = sphi 0, %s272
      %s275 = sphi 0, %s274
      %s289 = sphi 0, %s275
      %s293 = sphi 0, %s293
      %s295 = sphi 0, %s293
      %s296 = sphi 0, %s295
      %s310 = sphi 0, %s296
      %s314 = sphi 0, %s314
      %s316 = sphi 0, %s314
      %s317 = sphi 0, %s316
      %s331 = sphi 0, %s317
      %s335 = sphi 0, %s335
      %s337 = sphi 0, %s335
      %s338 = sphi 0, %s337
      %s352 = sphi 0, %s338
      %s356 = sphi 0, %s356
      %s358 = sphi 0, %s356
      %s359 = sphi 0, %s358
      %s373 = sphi 0, %s359
      %s379 = sphi 0, %s381
      %s382 = sphi 0, %s379
      %s383 = sphi 0, %s382
      %s399 = sphi 0, %s383
    $region4: #{qwen2_fcls_forward.1} parent=1 // loop_header_branch
      %31 = sbr.rel (%p29) target = $region8
    $region5: #{qwen2_fcls_forward.1} parent=1 // loop_body
      %s33 = ssub.s32 %s28, 1
      %s34 = ssub.s32 %s28, 2
      %s35 = sadd.s32 %s28, 1
      %s36 = ssub.s32 %s28, %s35
      %p37 = scmp.eq.s32.totalorder %s36, 0
      %s39 = sadd.s32 %s38, 1
      %s40 = scalar_select %p37, %s38, %s39
      %p43 = pneg %p37
      %p44 = scmp.eq.s32.totalorder %s28, 1
      %p45 = por %p43, %p44
      %p46 = scmp.ne.s32.totalorder %s38, %s41
      %p47 = scmp.eq.s32.totalorder %s28, 0
      %p48 = por %p46, %p47
      %p49 = scmp.ne.s32.totalorder %s38, %s41
      %p50 = scmp.eq.s32.totalorder %s33, 1
      %p51 = por %p49, %p50
      %p52 = scmp.ne.s32.totalorder %s41, %s42
      %p53 = scmp.eq.s32.totalorder %s33, 0
      %p54 = por %p52, %p53
      %p55 = scmp.ne.s32.totalorder %s41, %s42
      %p56 = scmp.eq.s32.totalorder %s34, 1
      %p57 = por %p55, %p56
      %p59 = scmp.ne.s32.totalorder %s42, %s58
      %p60 = scmp.eq.s32.totalorder %s34, 0
      %p61 = por %p59, %p60
      %s63 = sadd.s32 %s62, 1
      %p66 = scmp.eq.s32.totalorder %s28, 1
      %p67 = scmp.ne.s32.totalorder %s62, %s64
      %p68 = scmp.eq.s32.totalorder %s28, 0
      %p69 = por %p67, %p68
      %p70 = scmp.ne.s32.totalorder %s62, %s64
      %p71 = scmp.eq.s32.totalorder %s33, 1
      %p72 = por %p70, %p71
      %p73 = scmp.ne.s32.totalorder %s64, %s65
      %p74 = scmp.eq.s32.totalorder %s33, 0
      %p75 = por %p73, %p74
      %p76 = scmp.ne.s32.totalorder %s64, %s65
      %p77 = scmp.eq.s32.totalorder %s34, 1
      %p78 = por %p76, %p77
      %p80 = scmp.ne.s32.totalorder %s65, %s79
      %p81 = scmp.eq.s32.totalorder %s34, 0
      %p82 = por %p80, %p81
      %s84 = sadd.s32 %s83, 1
      %p87 = scmp.eq.s32.totalorder %s28, 1
      %p88 = scmp.ne.s32.totalorder %s83, %s85
      %p89 = scmp.eq.s32.totalorder %s28, 0
      %p90 = por %p88, %p89
      %p91 = scmp.ne.s32.totalorder %s83, %s85
      %p92 = scmp.eq.s32.totalorder %s33, 1
      %p93 = por %p91, %p92
      %p94 = scmp.ne.s32.totalorder %s85, %s86
      %p95 = scmp.eq.s32.totalorder %s33, 0
      %p96 = por %p94, %p95
      %p97 = scmp.ne.s32.totalorder %s85, %s86
      %p98 = scmp.eq.s32.totalorder %s34, 1
      %p99 = por %p97, %p98
      %p101 = scmp.ne.s32.totalorder %s86, %s100
      %p102 = scmp.eq.s32.totalorder %s34, 0
      %p103 = por %p101, %p102
      %s105 = sadd.s32 %s104, 1
      %p108 = scmp.eq.s32.totalorder %s28, 1
      %p109 = scmp.ne.s32.totalorder %s104, %s106
      %p110 = scmp.eq.s32.totalorder %s28, 0
      %p111 = por %p109, %p110
      %p112 = scmp.ne.s32.totalorder %s104, %s106
      %p113 = scmp.eq.s32.totalorder %s33, 1
      %p114 = por %p112, %p113
      %p115 = scmp.ne.s32.totalorder %s106, %s107
      %p116 = scmp.eq.s32.totalorder %s33, 0
      %p117 = por %p115, %p116
      %p118 = scmp.ne.s32.totalorder %s106, %s107
      %p119 = scmp.eq.s32.totalorder %s34, 1
      %p120 = por %p118, %p119
      %p122 = scmp.ne.s32.totalorder %s107, %s121
      %p123 = scmp.eq.s32.totalorder %s34, 0
      %p124 = por %p122, %p123
      %s126 = sadd.s32 %s125, 1
      %p129 = scmp.eq.s32.totalorder %s28, 1
      %p130 = scmp.ne.s32.totalorder %s125, %s127
      %p131 = scmp.eq.s32.totalorder %s28, 0
      %p132 = por %p130, %p131
      %p133 = scmp.ne.s32.totalorder %s125, %s127
      %p134 = scmp.eq.s32.totalorder %s33, 1
      %p135 = por %p133, %p134
      %p136 = scmp.ne.s32.totalorder %s127, %s128
      %p137 = scmp.eq.s32.totalorder %s33, 0
      %p138 = por %p136, %p137
      %p139 = scmp.ne.s32.totalorder %s127, %s128
      %p140 = scmp.eq.s32.totalorder %s34, 1
      %p141 = por %p139, %p140
      %p143 = scmp.ne.s32.totalorder %s128, %s142
      %p144 = scmp.eq.s32.totalorder %s34, 0
      %p145 = por %p143, %p144
      %s147 = sadd.s32 %s146, 1
      %p150 = scmp.eq.s32.totalorder %s28, 1
      %p151 = scmp.ne.s32.totalorder %s146, %s148
      %p152 = scmp.eq.s32.totalorder %s28, 0
      %p153 = por %p151, %p152
      %p154 = scmp.ne.s32.totalorder %s146, %s148
      %p155 = scmp.eq.s32.totalorder %s33, 1
      %p156 = por %p154, %p155
      %p157 = scmp.ne.s32.totalorder %s148, %s149
      %p158 = scmp.eq.s32.totalorder %s33, 0
      %p159 = por %p157, %p158
      %p160 = scmp.ne.s32.totalorder %s148, %s149
      %p161 = scmp.eq.s32.totalorder %s34, 1
      %p162 = por %p160, %p161
      %p164 = scmp.ne.s32.totalorder %s149, %s163
      %p165 = scmp.eq.s32.totalorder %s34, 0
      %p166 = por %p164, %p165
      %s168 = sadd.s32 %s167, 1
      %p171 = scmp.eq.s32.totalorder %s28, 1
      %p172 = scmp.ne.s32.totalorder %s167, %s169
      %p173 = scmp.eq.s32.totalorder %s28, 0
      %p174 = por %p172, %p173
      %p175 = scmp.ne.s32.totalorder %s167, %s169
      %p176 = scmp.eq.s32.totalorder %s33, 1
      %p177 = por %p175, %p176
      %p178 = scmp.ne.s32.totalorder %s169, %s170
      %p179 = scmp.eq.s32.totalorder %s33, 0
      %p180 = por %p178, %p179
      %p181 = scmp.ne.s32.totalorder %s169, %s170
      %p182 = scmp.eq.s32.totalorder %s34, 1
      %p183 = por %p181, %p182
      %p185 = scmp.ne.s32.totalorder %s170, %s184
      %p186 = scmp.eq.s32.totalorder %s34, 0
      %p187 = por %p185, %p186
      %s189 = sadd.s32 %s188, 1
      %p192 = scmp.eq.s32.totalorder %s28, 1
      %p193 = scmp.ne.s32.totalorder %s188, %s190
      %p194 = scmp.eq.s32.totalorder %s28, 0
      %p195 = por %p193, %p194
      %p196 = scmp.ne.s32.totalorder %s188, %s190
      %p197 = scmp.eq.s32.totalorder %s33, 1
      %p198 = por %p196, %p197
      %p199 = scmp.ne.s32.totalorder %s190, %s191
      %p200 = scmp.eq.s32.totalorder %s33, 0
      %p201 = por %p199, %p200
      %p202 = scmp.ne.s32.totalorder %s190, %s191
      %p203 = scmp.eq.s32.totalorder %s34, 1
      %p204 = por %p202, %p203
      %p206 = scmp.ne.s32.totalorder %s191, %s205
      %p207 = scmp.eq.s32.totalorder %s34, 0
      %p208 = por %p206, %p207
      %s210 = sadd.s32 %s209, 1
      %p213 = scmp.eq.s32.totalorder %s28, 1
      %p214 = scmp.ne.s32.totalorder %s209, %s211
      %p215 = scmp.eq.s32.totalorder %s28, 0
      %p216 = por %p214, %p215
      %p217 = scmp.ne.s32.totalorder %s209, %s211
      %p218 = scmp.eq.s32.totalorder %s33, 1
      %p219 = por %p217, %p218
      %p220 = scmp.ne.s32.totalorder %s211, %s212
      %p221 = scmp.eq.s32.totalorder %s33, 0
      %p222 = por %p220, %p221
      %p223 = scmp.ne.s32.totalorder %s211, %s212
      %p224 = scmp.eq.s32.totalorder %s34, 1
      %p225 = por %p223, %p224
      %p227 = scmp.ne.s32.totalorder %s212, %s226
      %p228 = scmp.eq.s32.totalorder %s34, 0
      %p229 = por %p227, %p228
      %s231 = sadd.s32 %s230, 1
      %p234 = scmp.eq.s32.totalorder %s28, 1
      %p235 = scmp.ne.s32.totalorder %s230, %s232
      %p236 = scmp.eq.s32.totalorder %s28, 0
      %p237 = por %p235, %p236
      %p238 = scmp.ne.s32.totalorder %s230, %s232
      %p239 = scmp.eq.s32.totalorder %s33, 1
      %p240 = por %p238, %p239
      %p241 = scmp.ne.s32.totalorder %s232, %s233
      %p242 = scmp.eq.s32.totalorder %s33, 0
      %p243 = por %p241, %p242
      %p244 = scmp.ne.s32.totalorder %s232, %s233
      %p245 = scmp.eq.s32.totalorder %s34, 1
      %p246 = por %p244, %p245
      %p248 = scmp.ne.s32.totalorder %s233, %s247
      %p249 = scmp.eq.s32.totalorder %s34, 0
      %p250 = por %p248, %p249
      %s252 = sadd.s32 %s251, 1
      %p255 = scmp.eq.s32.totalorder %s28, 1
      %p256 = scmp.ne.s32.totalorder %s251, %s253
      %p257 = scmp.eq.s32.totalorder %s28, 0
      %p258 = por %p256, %p257
      %p259 = scmp.ne.s32.totalorder %s251, %s253
      %p260 = scmp.eq.s32.totalorder %s33, 1
      %p261 = por %p259, %p260
      %p262 = scmp.ne.s32.totalorder %s253, %s254
      %p263 = scmp.eq.s32.totalorder %s33, 0
      %p264 = por %p262, %p263
      %p265 = scmp.ne.s32.totalorder %s253, %s254
      %p266 = scmp.eq.s32.totalorder %s34, 1
      %p267 = por %p265, %p266
      %p269 = scmp.ne.s32.totalorder %s254, %s268
      %p270 = scmp.eq.s32.totalorder %s34, 0
      %p271 = por %p269, %p270
      %s273 = sadd.s32 %s272, 1
      %p276 = scmp.eq.s32.totalorder %s28, 1
      %p277 = scmp.ne.s32.totalorder %s272, %s274
      %p278 = scmp.eq.s32.totalorder %s28, 0
      %p279 = por %p277, %p278
      %p280 = scmp.ne.s32.totalorder %s272, %s274
      %p281 = scmp.eq.s32.totalorder %s33, 1
      %p282 = por %p280, %p281
      %p283 = scmp.ne.s32.totalorder %s274, %s275
      %p284 = scmp.eq.s32.totalorder %s33, 0
      %p285 = por %p283, %p284
      %p286 = scmp.ne.s32.totalorder %s274, %s275
      %p287 = scmp.eq.s32.totalorder %s34, 1
      %p288 = por %p286, %p287
      %p290 = scmp.ne.s32.totalorder %s275, %s289
      %p291 = scmp.eq.s32.totalorder %s34, 0
      %p292 = por %p290, %p291
      %s294 = sadd.s32 %s293, 1
      %p297 = scmp.eq.s32.totalorder %s28, 1
      %p298 = scmp.ne.s32.totalorder %s293, %s295
      %p299 = scmp.eq.s32.totalorder %s28, 0
      %p300 = por %p298, %p299
      %p301 = scmp.ne.s32.totalorder %s293, %s295
      %p302 = scmp.eq.s32.totalorder %s33, 1
      %p303 = por %p301, %p302
      %p304 = scmp.ne.s32.totalorder %s295, %s296
      %p305 = scmp.eq.s32.totalorder %s33, 0
      %p306 = por %p304, %p305
      %p307 = scmp.ne.s32.totalorder %s295, %s296
      %p308 = scmp.eq.s32.totalorder %s34, 1
      %p309 = por %p307, %p308
      %p311 = scmp.ne.s32.totalorder %s296, %s310
      %p312 = scmp.eq.s32.totalorder %s34, 0
      %p313 = por %p311, %p312
      %s315 = sadd.s32 %s314, 1
      %p318 = scmp.eq.s32.totalorder %s28, 1
      %p319 = scmp.ne.s32.totalorder %s314, %s316
      %p320 = scmp.eq.s32.totalorder %s28, 0
      %p321 = por %p319, %p320
      %p322 = scmp.ne.s32.totalorder %s314, %s316
      %p323 = scmp.eq.s32.totalorder %s33, 1
      %p324 = por %p322, %p323
      %p325 = scmp.ne.s32.totalorder %s316, %s317
      %p326 = scmp.eq.s32.totalorder %s33, 0
      %p327 = por %p325, %p326
      %p328 = scmp.ne.s32.totalorder %s316, %s317
      %p329 = scmp.eq.s32.totalorder %s34, 1
      %p330 = por %p328, %p329
      %p332 = scmp.ne.s32.totalorder %s317, %s331
      %p333 = scmp.eq.s32.totalorder %s34, 0
      %p334 = por %p332, %p333
      %s336 = sadd.s32 %s335, 1
      %p339 = scmp.eq.s32.totalorder %s28, 1
      %p340 = scmp.ne.s32.totalorder %s335, %s337
      %p341 = scmp.eq.s32.totalorder %s28, 0
      %p342 = por %p340, %p341
      %p343 = scmp.ne.s32.totalorder %s335, %s337
      %p344 = scmp.eq.s32.totalorder %s33, 1
      %p345 = por %p343, %p344
      %p346 = scmp.ne.s32.totalorder %s337, %s338
      %p347 = scmp.eq.s32.totalorder %s33, 0
      %p348 = por %p346, %p347
      %p349 = scmp.ne.s32.totalorder %s337, %s338
      %p350 = scmp.eq.s32.totalorder %s34, 1
      %p351 = por %p349, %p350
      %p353 = scmp.ne.s32.totalorder %s338, %s352
      %p354 = scmp.eq.s32.totalorder %s34, 0
      %p355 = por %p353, %p354
      %s357 = sadd.s32 %s356, 1
      %p360 = scmp.eq.s32.totalorder %s28, 1
      %p361 = scmp.ne.s32.totalorder %s356, %s358
      %p362 = scmp.eq.s32.totalorder %s28, 0
      %p363 = por %p361, %p362
      %p364 = scmp.ne.s32.totalorder %s356, %s358
      %p365 = scmp.eq.s32.totalorder %s33, 1
      %p366 = por %p364, %p365
      %p367 = scmp.ne.s32.totalorder %s358, %s359
      %p368 = scmp.eq.s32.totalorder %s33, 0
      %p369 = por %p367, %p368
      %p370 = scmp.ne.s32.totalorder %s358, %s359
      %p371 = scmp.eq.s32.totalorder %s34, 1
      %p372 = por %p370, %p371
      %p374 = scmp.ne.s32.totalorder %s359, %s373
      %p375 = scmp.eq.s32.totalorder %s34, 0
      %p376 = por %p374, %p375
      %s377 = ssub.s32 %s28, %s35
      %p378 = scmp.eq.s32.totalorder %s377, 0
      %s380 = sadd.s32 %s379, 1
      %s381 = scalar_select %p378, %s379, %s380
      %p384 = pneg %p378
      %p385 = scmp.eq.s32.totalorder %s28, 1
      %p386 = por %p384, %p385
      %p387 = scmp.ne.s32.totalorder %s379, %s382
      %p388 = scmp.eq.s32.totalorder %s28, 0
      %p389 = por %p387, %p388
      %p390 = scmp.ne.s32.totalorder %s379, %s382
      %p391 = scmp.eq.s32.totalorder %s33, 1
      %p392 = por %p390, %p391
      %p393 = scmp.ne.s32.totalorder %s382, %s383
      %p394 = scmp.eq.s32.totalorder %s33, 0
      %p395 = por %p393, %p394
      %p396 = scmp.ne.s32.totalorder %s382, %s383
      %p397 = scmp.eq.s32.totalorder %s34, 1
      %p398 = por %p396, %p397
      %p400 = scmp.ne.s32.totalorder %s383, %s399
      %p401 = scmp.eq.s32.totalorder %s34, 0
      %p402 = por %p400, %p401
      %p403 = scmp.le.s32.totalorder 1, %s28
      %p404 = scmp.lt.s32.totalorder %s28, 3
      %p405 = pnand %p403, %p404
      %p406 = pneg %p405
      // Predicated region
      $region9: #{qwen2_fcls_forward.1} parent=5 // pred_check
        _
      $region10: #{qwen2_fcls_forward.1} parent=5 // pred_check_branch
        %408 = sbr.rel (%p405) target = $region12
      $region11: #{qwen2_fcls_forward.1} parent=5 // pred_region
        %s409 = ssub.s32 %s28, 1
        // Predicated region
        $region13: #{qwen2_fcls_forward.1} parent=11 // pred_check
          %p410 = pneg %p75
        $region14: #{qwen2_fcls_forward.1} parent=11 // pred_check_branch
          %412 = sbr.rel (%p410) target = $region16
        $region15: #{qwen2_fcls_forward.1} parent=11 // pred_region
          _
        $region16: #{qwen2_fcls_forward.1} parent=11 // pred_fallthru
          _
        // Predicated region
        $region17: #{qwen2_fcls_forward.1} parent=11 // pred_check
          %p413 = pneg %p96
        $region18: #{qwen2_fcls_forward.1} parent=11 // pred_check_branch
          %415 = sbr.rel (%p413) target = $region20
        $region19: #{qwen2_fcls_forward.1} parent=11 // pred_region
          _
        $region20: #{qwen2_fcls_forward.1} parent=11 // pred_fallthru
          _
        // Predicated region
        $region21: #{qwen2_fcls_forward.1} parent=11 // pred_check
          %p416 = pneg %p117
        $region22: #{qwen2_fcls_forward.1} parent=11 // pred_check_branch
          %418 = sbr.rel (%p416) target = $region24
        $region23: #{qwen2_fcls_forward.1} parent=11 // pred_region
          %420 = vsyncadd [#allocation3], 0
          %s422 = sshll.u32 %s3, 4
          %s423 = int_to_ptr.hbm [resolvable:$true] %s422
          %s424 = sshll.u32 [#allocation2], 4
          %s425 = int_to_ptr.vmem [resolvable:$true] %s424
          %427 = dma.hbm_to_vmem [thread:$0]  %s423, 16, %s425, [#allocation3]
        $region24: #{qwen2_fcls_forward.1} parent=11 // pred_fallthru
          _
        // Predicated region
        $region25: #{qwen2_fcls_forward.1} parent=11 // pred_check
          %p428 = pneg %p138
        $region26: #{qwen2_fcls_forward.1} parent=11 // pred_check_branch
          %430 = sbr.rel (%p428) target = $region28
        $region27: #{qwen2_fcls_forward.1} parent=11 // pred_region
          %432 = vsyncadd [#allocation6], 0
          %s433 = sshll.u32 %s4, 4
          %s434 = int_to_ptr.hbm [resolvable:$true] %s433
          %s435 = sshll.u32 [#allocation5], 4
          %s436 = int_to_ptr.vmem [resolvable:$true] %s435
          %441 = dma.hbm_to_vmem [thread:$0]  %s434, 256, %s436, [#allocation6], 128, 128, 8
        $region28: #{qwen2_fcls_forward.1} parent=11 // pred_fallthru
          _
        // Predicated region
        $region29: #{qwen2_fcls_forward.1} parent=11 // pred_check
          %p442 = pneg %p159
        $region30: #{qwen2_fcls_forward.1} parent=11 // pred_check_branch
          %444 = sbr.rel (%p442) target = $region32
        $region31: #{qwen2_fcls_forward.1} parent=11 // pred_region
          _
        $region32: #{qwen2_fcls_forward.1} parent=11 // pred_fallthru
          _
        // Predicated region
        $region33: #{qwen2_fcls_forward.1} parent=11 // pred_check
          %p445 = pneg %p180
        $region34: #{qwen2_fcls_forward.1} parent=11 // pred_check_branch
          %447 = sbr.rel (%p445) target = $region36
        $region35: #{qwen2_fcls_forward.1} parent=11 // pred_region
          _
        $region36: #{qwen2_fcls_forward.1} parent=11 // pred_fallthru
          _
        // Predicated region
        $region37: #{qwen2_fcls_forward.1} parent=11 // pred_check
          %p448 = pneg %p201
        $region38: #{qwen2_fcls_forward.1} parent=11 // pred_check_branch
          %450 = sbr.rel (%p448) target = $region40
        $region39: #{qwen2_fcls_forward.1} parent=11 // pred_region
          _
        $region40: #{qwen2_fcls_forward.1} parent=11 // pred_fallthru
          _
        // Predicated region
        $region41: #{qwen2_fcls_forward.1} parent=11 // pred_check
          %p451 = pneg %p222
        $region42: #{qwen2_fcls_forward.1} parent=11 // pred_check_branch
          %453 = sbr.rel (%p451) target = $region44
        $region43: #{qwen2_fcls_forward.1} parent=11 // pred_region
          _
        $region44: #{qwen2_fcls_forward.1} parent=11 // pred_fallthru
          _
        // Predicated region
        $region45: #{qwen2_fcls_forward.1} parent=11 // pred_check
          %p454 = pneg %p243
        $region46: #{qwen2_fcls_forward.1} parent=11 // pred_check_branch
          %456 = sbr.rel (%p454) target = $region48
        $region47: #{qwen2_fcls_forward.1} parent=11 // pred_region
          _
        $region48: #{qwen2_fcls_forward.1} parent=11 // pred_fallthru
          _
        // Predicated region
        $region49: #{qwen2_fcls_forward.1} parent=11 // pred_check
          %p457 = pneg %p264
        $region50: #{qwen2_fcls_forward.1} parent=11 // pred_check_branch
          %459 = sbr.rel (%p457) target = $region52
        $region51: #{qwen2_fcls_forward.1} parent=11 // pred_region
          _
        $region52: #{qwen2_fcls_forward.1} parent=11 // pred_fallthru
          _
        // Predicated region
        $region53: #{qwen2_fcls_forward.1} parent=11 // pred_check
          %p460 = pneg %p285
        $region54: #{qwen2_fcls_forward.1} parent=11 // pred_check_branch
          %462 = sbr.rel (%p460) target = $region56
        $region55: #{qwen2_fcls_forward.1} parent=11 // pred_region
          _
        $region56: #{qwen2_fcls_forward.1} parent=11 // pred_fallthru
          _
        // Predicated region
        $region57: #{qwen2_fcls_forward.1} parent=11 // pred_check
          %p463 = pneg %p306
        $region58: #{qwen2_fcls_forward.1} parent=11 // pred_check_branch
          %465 = sbr.rel (%p463) target = $region60
        $region59: #{qwen2_fcls_forward.1} parent=11 // pred_region
          _
        $region60: #{qwen2_fcls_forward.1} parent=11 // pred_fallthru
          _
        // Predicated region
        $region61: #{qwen2_fcls_forward.1} parent=11 // pred_check
          %p466 = pneg %p327
        $region62: #{qwen2_fcls_forward.1} parent=11 // pred_check_branch
          %468 = sbr.rel (%p466) target = $region64
        $region63: #{qwen2_fcls_forward.1} parent=11 // pred_region
          %470 = vsyncadd [#allocation6], 0
          %s472 = sshll.u32 %s13, 4
          %s473 = int_to_ptr.hbm [resolvable:$true] %s472
          %s474 = sshll.u32 [#allocation7], 4
          %s475 = int_to_ptr.vmem [resolvable:$true] %s474
          %477 = dma.hbm_to_vmem [thread:$0]  %s473, 16, %s475, [#allocation6]
        $region64: #{qwen2_fcls_forward.1} parent=11 // pred_fallthru
          _
        // Predicated region
        $region65: #{qwen2_fcls_forward.1} parent=11 // pred_check
          %p478 = pneg %p348
        $region66: #{qwen2_fcls_forward.1} parent=11 // pred_check_branch
          %480 = sbr.rel (%p478) target = $region68
        $region67: #{qwen2_fcls_forward.1} parent=11 // pred_region
          %482 = vsyncadd [#allocation9], 0
          %s483 = sshll.u32 %s14, 4
          %s484 = int_to_ptr.hbm [resolvable:$true] %s483
          %s485 = sshll.u32 [#allocation8], 4
          %s486 = int_to_ptr.vmem [resolvable:$true] %s485
          %491 = dma.hbm_to_vmem [thread:$0]  %s484, 256, %s486, [#allocation9], 64, 64, 4
        $region68: #{qwen2_fcls_forward.1} parent=11 // pred_fallthru
          _
        // Predicated region
        $region69: #{qwen2_fcls_forward.1} parent=11 // pred_check
          %p492 = pneg %p369
        $region70: #{qwen2_fcls_forward.1} parent=11 // pred_check_branch
          %494 = sbr.rel (%p492) target = $region72
        $region71: #{qwen2_fcls_forward.1} parent=11 // pred_region
          %496 = vsyncadd [#allocation9], 0
          %s498 = sshll.u32 %s15, 4
          %s499 = int_to_ptr.hbm [resolvable:$true] %s498
          %s500 = sshll.u32 [#allocation10], 4
          %s501 = int_to_ptr.vmem [resolvable:$true] %s500
          %503 = dma.hbm_to_vmem [thread:$0]  %s499, 16, %s501, [#allocation9]
        $region72: #{qwen2_fcls_forward.1} parent=11 // pred_fallthru
          _
      $region12: #{qwen2_fcls_forward.1} parent=5 // pred_fallthru
        _
      %p504 = scmp.lt.s32.totalorder %s28, 2
      // Predicated region
      $region73: #{qwen2_fcls_forward.1} parent=5 // pred_check
        %p505 = pneg %p504
      $region74: #{qwen2_fcls_forward.1} parent=5 // pred_check_branch
        %507 = sbr.rel (%p505) target = $region76
      $region75: #{qwen2_fcls_forward.1} parent=5 // pred_region
        // Predicated region
        $region77: #{qwen2_fcls_forward.1} parent=75 // pred_check
          %p508 = pneg %p48
        $region78: #{qwen2_fcls_forward.1} parent=75 // pred_check_branch
          %510 = sbr.rel (%p508) target = $region80
        $region79: #{qwen2_fcls_forward.1} parent=75 // pred_region
          %p511 = scmp.lt.s32.totalorder %s28, 1
          %s512 = scalar_select %p511, %s28, 1
          %s513 = smul.addr %s512, 4
          %s514 = scalar_lea.vmem %s0, %s513
        $region80: #{qwen2_fcls_forward.1} parent=75 // pred_fallthru
          _
      $region76: #{qwen2_fcls_forward.1} parent=5 // pred_fallthru
        _
      %p515 = scmp.le.s32.totalorder 1, %s28
      %p516 = scmp.lt.s32.totalorder %s28, 3
      %p517 = pnand %p515, %p516
      %p518 = pneg %p517
      // Predicated region
      $region81: #{qwen2_fcls_forward.1} parent=5 // pred_check
        _
      $region82: #{qwen2_fcls_forward.1} parent=5 // pred_check_branch
        %520 = sbr.rel (%p517) target = $region84
      $region83: #{qwen2_fcls_forward.1} parent=5 // pred_region
        %s521 = ssub.s32 %s28, 1
        // Predicated region
        $region85: #{qwen2_fcls_forward.1} parent=83 // pred_check
          %p522 = pneg %p117
        $region86: #{qwen2_fcls_forward.1} parent=83 // pred_check_branch
          %524 = sbr.rel (%p522) target = $region88
        $region87: #{qwen2_fcls_forward.1} parent=83 // pred_region
          %526 = dma.done [#allocation3], 16
        $region88: #{qwen2_fcls_forward.1} parent=83 // pred_fallthru
          _
        // Predicated region
        $region89: #{qwen2_fcls_forward.1} parent=83 // pred_check
          %p527 = pneg %p138
        $region90: #{qwen2_fcls_forward.1} parent=83 // pred_check_branch
          %529 = sbr.rel (%p527) target = $region92
        $region91: #{qwen2_fcls_forward.1} parent=83 // pred_region
          %531 = dma.done [#allocation6], 256
        $region92: #{qwen2_fcls_forward.1} parent=83 // pred_fallthru
          _
        // Predicated region
        $region93: #{qwen2_fcls_forward.1} parent=83 // pred_check
          %p532 = pneg %p327
        $region94: #{qwen2_fcls_forward.1} parent=83 // pred_check_branch
          %534 = sbr.rel (%p532) target = $region96
        $region95: #{qwen2_fcls_forward.1} parent=83 // pred_region
          %536 = dma.done [#allocation6], 16
        $region96: #{qwen2_fcls_forward.1} parent=83 // pred_fallthru
          _
        // Predicated region
        $region97: #{qwen2_fcls_forward.1} parent=83 // pred_check
          %p537 = pneg %p348
        $region98: #{qwen2_fcls_forward.1} parent=83 // pred_check_branch
          %539 = sbr.rel (%p537) target = $region100
        $region99: #{qwen2_fcls_forward.1} parent=83 // pred_region
          %541 = dma.done [#allocation9], 256
        $region100: #{qwen2_fcls_forward.1} parent=83 // pred_fallthru
          _
        // Predicated region
        $region101: #{qwen2_fcls_forward.1} parent=83 // pred_check
          %p542 = pneg %p369
        $region102: #{qwen2_fcls_forward.1} parent=83 // pred_check_branch
          %544 = sbr.rel (%p542) target = $region104
        $region103: #{qwen2_fcls_forward.1} parent=83 // pred_region
          %546 = dma.done [#allocation9], 16
        $region104: #{qwen2_fcls_forward.1} parent=83 // pred_fallthru
          _
        %p547 = scmp.lt.s32.totalorder %s33, 1
        %s548 = scalar_select %p547, %s33, 1
        %s549 = smul.addr %s548, 4
        %s550 = scalar_lea.vmem %s0, %s549
        %p551 = pneg %p54
        %p552 = pneg %p51
        %p553 = pneg %p75
        %p554 = pneg %p72
        %p555 = pneg %p96
        %p556 = pneg %p93
        %p557 = pneg %p117
        %p558 = pneg %p114
        %p559 = pneg %p138
        %p560 = pneg %p135
        %p561 = pneg %p159
        %p562 = pneg %p156
        %p563 = pneg %p180
        %p564 = pneg %p177
        %p565 = pneg %p201
        %p566 = pneg %p198
        %p567 = pneg %p222
        %p568 = pneg %p219
        %p569 = pneg %p243
        %p570 = pneg %p240
        %p571 = pneg %p264
        %p572 = pneg %p261
        %p573 = pneg %p285
        %p574 = pneg %p282
        %p575 = pneg %p306
        %p576 = pneg %p303
        %p577 = pneg %p327
        %p578 = pneg %p324
        %p579 = pneg %p348
        %p580 = pneg %p345
        %p581 = pneg %p369
        %p582 = pneg %p366
        %p583 = pneg %p395
        %p584 = pneg %p392
        %s585 = sand.u32 %s382, 1
        %s586 = scalar_lea.sflag [#allocation4], %s585
        %s587 = sand.u32 %s382, 1
        %s588 = scalar_lea.vmem [#allocation11], %s587
        %p589 = scmp.lt.s32.totalorder %s33, 1
        %s590 = scalar_select %p589, %s33, 1
        %s591 = smul.addr %s590, 4
        %s592 = scalar_lea.vmem %s0, %s591
        %v594 = vld [vmem:[%s592] sm:$0xf]
        %v595 = vld [vmem:[%s1] sm:$0xf]
        %v596 = vld [vmem:[%s1 + $0x4] sm:$0xf]
        %v597 = vld [vmem:[%s1 + $0x8] sm:$0xf]
        %v598 = vld [vmem:[%s1 + $0xc] sm:$0xf]
        %v599 = vld [vmem:[%s1 + $0x10] sm:$0xf]
        %v600 = vld [vmem:[%s1 + $0x14] sm:$0xf]
        %v607 = vunpack.c.l.b16 %v595
        %v608 = vunpack.c.l.b16 %v596
        %v609 = vunpack.c.l.b16 %v597
        %v610 = vunpack.c.l.b16 %v598
        %v611 = vunpack.c.l.b16 %v599
        %v612 = vunpack.c.l.b16 %v600
        %v613 = vpack.c.b16 %v608, %v607
        %v614 = vpack.c.b16 %v610, %v609
        %v615 = vpack.c.b16 %v612, %v611
        %vm619 = vcmask 392192
        %v621 = vsel %vm619, %v594, 0
        %623 = vmatpush.bf16.msra.mxu0 0
        %624 = vmatpush.bf16.msra.mxu0 0
        %625 = vmatpush.bf16.msra.mxu0 0
        %626 = vmatpush.bf16.msra.mxu0 0
        %627 = vmatpush.bf16.msra.mxu0 0
        %628 = vmatpush.bf16.msra.mxu0 %v615
        %629 = vmatpush.bf16.msra.mxu0 %v614
        %630 = vmatpush.bf16.msra.mxu0 %v613
        %631 = vmatmul.bf16.gmra.mxu0 %v621
        %v632 = vpop.f32.mrf.mxu0
        %v633 = vadd.f32 0.0, %v632
        %v634 = vpop.f32.mrf.mxu0
        %635 = vdwg.mxu0
        %v636 = vld [vmem:[%s2] sm:$0x1]
        %v637 = vld [vmem:[#allocation2] sm:$0x1]
        %v639 = vrot.slane %v633, 7
        %v642 = vperm.slane %v637, 0
        %vm644 = vcmask 1040384
        %v645 = vsel %vm644, %v636, %v639
        %v646 = vsel %vm644, %v639, %v642
        %v647 = vld [vmem:[#allocation5] sm:$0xff]
        %v648 = vld [vmem:[#allocation5 + $0x8] sm:$0x3]
        %v649 = vld [vmem:[%s5] sm:$0xff]
        %v650 = vld [vmem:[%s5 + $0x8] sm:$0x3]
        %v651 = vlaneseq
        %v652 = vshrl.u32 %v651, 7
        %v653 = vadd.s32 %v652, 8
        %v654 = vlaneseq
        %v655 = vand.u32 %v654, 127
        %vm656 = vcmp.ge.s32.totalorder %v652, %v655
        %vm657 = vcmp.ge.s32.totalorder %v653, %v655
        %v658 = vsel %vm656, 0.0, -1e+30
        %v659 = vsel %vm657, 0.0, -1e+30
        %v660 = vld [vmem:[%s6] sm:$0x1]
        %v661 = vmul.f32 %v645, %v645
        %v662 = vmul.f32 %v646, %v646
        %vm663 = vcmask 261120
        %v664 = vsel %vm663, %v661, 0.0
        %665 = vadd.xlane.f32.xlu0 %v664
        %v666 = vpop.xlane.xlu0 %665
        %vm667 = vcmask 254976
        %v668 = vsel %vm667, %v662, 0.0
        %669 = vadd.xlane.f32.xlu0 %v668
        %v670 = vpop.xlane.xlu0 %669
        %v671 = vrcp.pop 32.0
        %v672 = vmul.f32 32.0, %v671
        %v673 = vsub.f32 1.0, %v672
        %v674 = vmul.f32 %v671, %v673
        %v675 = vadd.f32 %v671, %v674
        %vm676 = vweird.f32 %v671
        %v677 = vsel %vm676, %v671, %v675
        %v678 = vmul.f32 %v666, %v677
        %v679 = vmul.f32 %v670, %v677
        %v680 = vadd.f32 %v678, 1e-06
        %v681 = vadd.f32 %v679, 1e-06
        %v682 = vrsqrt.pop %v680
        %v683 = vmul.f32 %v682, %v680
        %v684 = vmul.f32 %v683, %v682
        %v685 = vmul.f32 0.5, %v684
        %v686 = vsub.f32 1.5, %v685
        %v687 = vmul.f32 %v682, %v686
        %vm688 = vweird.f32 %v680
        %vm689 = vweird.f32 %v682
        %vm690 = vmor %vm688, %vm689
        %v691 = vsel %vm690, %v682, %v687
        %v692 = vrsqrt.pop %v681
        %v693 = vmul.f32 %v692, %v681
        %v694 = vmul.f32 %v693, %v692
        %v695 = vmul.f32 0.5, %v694
        %v696 = vsub.f32 1.5, %v695
        %v697 = vmul.f32 %v692, %v696
        %vm698 = vweird.f32 %v681
        %vm699 = vweird.f32 %v692
        %vm700 = vmor %vm698, %vm699
        %v701 = vsel %vm700, %v692, %v697
        %v702 = vmul.f32 %v645, %v691
        %v703 = vmul.f32 %v646, %v701
        %v705 = vperm.slane %v660, 0
        %v707 = vmul.f32 %v702, %v705
        %v708 = vmul.f32 %v703, %v705
        %v709 = vld [vmem:[%s7] sm:$0xff]
        %v710 = vld [vmem:[%s7 + $0x8] sm:$0xff]
        %v711 = vld [vmem:[%s7 + $0x10] sm:$0xff]
        %v712 = vld [vmem:[%s7 + $0x18] sm:$0xff]
        %v713 = vpack.c.bf16 %v708, %v707
        %v714 = vld [vmem:[%s8] sm:$0x3]
        %v716 = vperm.slane %v714, 0
        %v717 = vperm.slane %v714, 1
        %v724 = vunpack.c.l.b16 %v709
        %v725 = vunpack.c.h.b16 %v709
        %v726 = vunpack.c.l.b16 %v710
        %v727 = vunpack.c.h.b16 %v710
        %v728 = vunpack.c.l.b16 %v711
        %v729 = vunpack.c.h.b16 %v711
        %v730 = vunpack.c.l.b16 %v712
        %v731 = vunpack.c.h.b16 %v712
        %v732 = vpack.c.b16 %v726, %v724
        %v733 = vpack.c.b16 %v727, %v725
        %v734 = vpack.c.b16 %v730, %v728
        %v735 = vpack.c.b16 %v731, %v729
        %v741 = vsel %vm663, %v713, 0
        %743 = vmatpush.bf16.msra.mxu0 0
        %744 = vmatpush.bf16.msra.mxu0 0
        %745 = vmatpush.bf16.msra.mxu0 0
        %746 = vmatpush.bf16.msra.mxu0 0
        %747 = vmatpush.bf16.msra.mxu0 0
        %748 = vmatpush.bf16.msra.mxu0 0
        %749 = vmatpush.bf16.msra.mxu0 %v734
        %750 = vmatpush.bf16.msra.mxu0 %v732
        %751 = vmatmul.bf16.gmra.mxu0 %v741
        %v752 = vpop.f32.mrf.mxu0
        %v753 = vadd.f32 %v716, %v752
        %v754 = vpop.f32.mrf.mxu0
        %v755 = vadd.f32 %v716, %v754
        %756 = vdwg.mxu0
        %757 = vmatpush.bf16.msra.mxu0 0
        %758 = vmatpush.bf16.msra.mxu0 0
        %759 = vmatpush.bf16.msra.mxu0 0
        %760 = vmatpush.bf16.msra.mxu0 0
        %761 = vmatpush.bf16.msra.mxu0 0
        %762 = vmatpush.bf16.msra.mxu0 0
        %763 = vmatpush.bf16.msra.mxu0 %v735
        %764 = vmatpush.bf16.msra.mxu0 %v733
        %765 = vmatmul.bf16.gmra.mxu0 %v741
        %v766 = vpop.f32.mrf.mxu0
        %v767 = vadd.f32 %v717, %v766
        %v768 = vpop.f32.mrf.mxu0
        %v769 = vadd.f32 %v717, %v768
        %770 = vdwg.mxu0
        %v771 = vmul.f32 %v753, %v647
        %v772 = vmul.f32 %v755, %v648
        %775 = vrot.lane.b32.xlu0 %v649, 96
        %v776 = vpop.permute.xlu0 %775
        %777 = vrot.lane.b32.xlu0 %v650, 96
        %v778 = vpop.permute.xlu0 %777
        %v781 = vmul.f32 %v753, %v776
        %v782 = vmul.f32 %v755, %v778
        %785 = vrot.lane.b32.xlu0 %v781, 32
        %v786 = vpop.permute.xlu0 %785
        %787 = vrot.lane.b32.xlu0 %v782, 32
        %v788 = vpop.permute.xlu0 %787
        %v791 = vadd.f32 %v771, %v786
        %v792 = vadd.f32 %v772, %v788
        %v793 = vpack.c.bf16 %v791, %v791
        %v794 = vpack.c.bf16 %v792, %v792
        %797 = vrot.lane.b32.xlu0 %v647, 32
        %v798 = vpop.permute.xlu0 %797
        %799 = vrot.lane.b32.xlu0 %v648, 32
        %v800 = vpop.permute.xlu0 %799
        %v803 = vmul.f32 %v753, %v798
        %v804 = vmul.f32 %v755, %v800
        %v805 = vmul.f32 %v767, %v649
        %v806 = vmul.f32 %v769, %v650
        %809 = vrot.lane.b32.xlu0 %v805, 32
        %v810 = vpop.permute.xlu0 %809
        %811 = vrot.lane.b32.xlu0 %v806, 32
        %v812 = vpop.permute.xlu0 %811
        %v815 = vadd.f32 %v803, %v810
        %v816 = vadd.f32 %v804, %v812
        %v817 = vpack.c.bf16 %v815, %v815
        %v818 = vpack.c.bf16 %v816, %v816
        %v819 = vpack.c.bf16 %v753, %v753
        %v820 = vpack.c.bf16 %v755, %v755
        %823 = vrot.lane.b32.xlu0 %v793, 120
        %v824 = vpop.permute.xlu0 %823
        %825 = vrot.lane.b32.xlu0 %v794, 120
        %v826 = vpop.permute.xlu0 %825
        %827 = vrot.lane.b32.xlu0 %v793, 112
        %v828 = vpop.permute.xlu0 %827
        %829 = vrot.lane.b32.xlu0 %v794, 112
        %v830 = vpop.permute.xlu0 %829
        %831 = vrot.lane.b32.xlu0 %v793, 104
        %v832 = vpop.permute.xlu0 %831
        %833 = vrot.lane.b32.xlu0 %v794, 104
        %v834 = vpop.permute.xlu0 %833
        %837 = vrot.lane.b32.xlu0 %v817, 120
        %v838 = vpop.permute.xlu0 %837
        %839 = vrot.lane.b32.xlu0 %v818, 120
        %v840 = vpop.permute.xlu0 %839
        %841 = vrot.lane.b32.xlu0 %v817, 112
        %v842 = vpop.permute.xlu0 %841
        %843 = vrot.lane.b32.xlu0 %v818, 112
        %v844 = vpop.permute.xlu0 %843
        %845 = vrot.lane.b32.xlu0 %v817, 104
        %v846 = vpop.permute.xlu0 %845
        %847 = vrot.lane.b32.xlu0 %v818, 104
        %v848 = vpop.permute.xlu0 %847
        %851 = vrot.lane.b32.xlu0 %v819, 120
        %v852 = vpop.permute.xlu0 %851
        %853 = vrot.lane.b32.xlu0 %v820, 120
        %v854 = vpop.permute.xlu0 %853
        %855 = vrot.lane.b32.xlu0 %v819, 112
        %v856 = vpop.permute.xlu0 %855
        %857 = vrot.lane.b32.xlu0 %v820, 112
        %v858 = vpop.permute.xlu0 %857
        %859 = vrot.lane.b32.xlu0 %v819, 104
        %v860 = vpop.permute.xlu0 %859
        %861 = vrot.lane.b32.xlu0 %v820, 104
        %v862 = vpop.permute.xlu0 %861
        %v863 = vunpack.c.l.b16 %v793
        %v864 = vunpack.c.l.b16 %v794
        %v865 = vpack.c.b16 %v864, %v863
        %v866 = vunpack.c.l.b16 %v817
        %v867 = vunpack.c.l.b16 %v818
        %v868 = vpack.c.b16 %v867, %v866
        %869 = vrot.lane.b32.xlu0 %v868, 96
        %v870 = vpop.permute.xlu0 %869
        %vm871 = vcmask 64512
        %v873 = vsel %vm871, %v865, 0
        %v876 = vsel %vm871, %v870, 0
        %878 = vmatpush.bf16.xpose.msra.mxu0 0
        %879 = vmatpush.bf16.xpose.msra.mxu0 0
        %880 = vmatpush.bf16.xpose.msra.mxu0 0
        %881 = vmatpush.bf16.xpose.msra.mxu0 0
        %882 = vmatpush.bf16.xpose.msra.mxu0 0
        %883 = vmatpush.bf16.xpose.msra.mxu0 0
        %884 = vmatpush.bf16.xpose.msra.mxu0 0
        %885 = vmatpush.bf16.xpose.msra.mxu0 %v876
        %886 = vmatmul.bf16.gmra.mxu0 %v873
        %v887 = vpop.f32.mrf.mxu0
        %v888 = vadd.f32 %v658, %v887
        %v889 = vpop.f32.mrf.mxu0
        %v890 = vadd.f32 %v659, %v889
        %891 = vdwg.mxu0
        %v892 = vunpack.c.l.b16 %v824
        %v893 = vunpack.c.l.b16 %v826
        %v894 = vpack.c.b16 %v893, %v892
        %v895 = vunpack.c.l.b16 %v838
        %v896 = vunpack.c.l.b16 %v840
        %v897 = vpack.c.b16 %v896, %v895
        %898 = vrot.lane.b32.xlu0 %v897, 96
        %v899 = vpop.permute.xlu0 %898
        %v901 = vsel %vm871, %v894, 0
        %v904 = vsel %vm871, %v899, 0
        %906 = vmatpush.bf16.xpose.msra.mxu0 0
        %907 = vmatpush.bf16.xpose.msra.mxu0 0
        %908 = vmatpush.bf16.xpose.msra.mxu0 0
        %909 = vmatpush.bf16.xpose.msra.mxu0 0
        %910 = vmatpush.bf16.xpose.msra.mxu0 0
        %911 = vmatpush.bf16.xpose.msra.mxu0 0
        %912 = vmatpush.bf16.xpose.msra.mxu0 0
        %913 = vmatpush.bf16.xpose.msra.mxu0 %v904
        %914 = vmatmul.bf16.gmra.mxu0 %v901
        %v915 = vpop.f32.mrf.mxu0
        %v916 = vadd.f32 %v658, %v915
        %v917 = vpop.f32.mrf.mxu0
        %v918 = vadd.f32 %v659, %v917
        %919 = vdwg.mxu0
        %v920 = vunpack.c.l.b16 %v828
        %v921 = vunpack.c.l.b16 %v830
        %v922 = vpack.c.b16 %v921, %v920
        %v923 = vunpack.c.l.b16 %v842
        %v924 = vunpack.c.l.b16 %v844
        %v925 = vpack.c.b16 %v924, %v923
        %926 = vrot.lane.b32.xlu0 %v925, 96
        %v927 = vpop.permute.xlu0 %926
        %v929 = vsel %vm871, %v922, 0
        %v932 = vsel %vm871, %v927, 0
        %934 = vmatpush.bf16.xpose.msra.mxu0 0
        %935 = vmatpush.bf16.xpose.msra.mxu0 0
        %936 = vmatpush.bf16.xpose.msra.mxu0 0
        %937 = vmatpush.bf16.xpose.msra.mxu0 0
        %938 = vmatpush.bf16.xpose.msra.mxu0 0
        %939 = vmatpush.bf16.xpose.msra.mxu0 0
        %940 = vmatpush.bf16.xpose.msra.mxu0 0
        %941 = vmatpush.bf16.xpose.msra.mxu0 %v932
        %942 = vmatmul.bf16.gmra.mxu0 %v929
        %v943 = vpop.f32.mrf.mxu0
        %v944 = vadd.f32 %v658, %v943
        %v945 = vpop.f32.mrf.mxu0
        %v946 = vadd.f32 %v659, %v945
        %947 = vdwg.mxu0
        %v948 = vunpack.c.l.b16 %v832
        %v949 = vunpack.c.l.b16 %v834
        %v950 = vpack.c.b16 %v949, %v948
        %v951 = vunpack.c.l.b16 %v846
        %v952 = vunpack.c.l.b16 %v848
        %v953 = vpack.c.b16 %v952, %v951
        %954 = vrot.lane.b32.xlu0 %v953, 96
        %v955 = vpop.permute.xlu0 %954
        %v957 = vsel %vm871, %v950, 0
        %v960 = vsel %vm871, %v955, 0
        %962 = vmatpush.bf16.xpose.msra.mxu0 0
        %963 = vmatpush.bf16.xpose.msra.mxu0 0
        %964 = vmatpush.bf16.xpose.msra.mxu0 0
        %965 = vmatpush.bf16.xpose.msra.mxu0 0
        %966 = vmatpush.bf16.xpose.msra.mxu0 0
        %967 = vmatpush.bf16.xpose.msra.mxu0 0
        %968 = vmatpush.bf16.xpose.msra.mxu0 0
        %969 = vmatpush.bf16.xpose.msra.mxu0 %v960
        %970 = vmatmul.bf16.gmra.mxu0 %v957
        %v971 = vpop.f32.mrf.mxu0
        %v972 = vadd.f32 %v658, %v971
        %v973 = vpop.f32.mrf.mxu0
        %v974 = vadd.f32 %v659, %v973
        %975 = vdwg.mxu0
        %vm976 = vcmask 80896
        %v977 = vsel %vm976, %v888, -inf
        %978 = vmax.xlane.f32.xlu0 %v977
        %v979 = vpop.xlane.xlu0 %978
        %vm980 = vcmask 74752
        %v981 = vsel %vm980, %v890, -inf
        %982 = vmax.xlane.f32.xlu0 %v981
        %v983 = vpop.xlane.xlu0 %982
        %v984 = vsel %vm976, %v916, -inf
        %985 = vmax.xlane.f32.xlu0 %v984
        %v986 = vpop.xlane.xlu0 %985
        %v987 = vsel %vm980, %v918, -inf
        %988 = vmax.xlane.f32.xlu0 %v987
        %v989 = vpop.xlane.xlu0 %988
        %v990 = vsel %vm976, %v944, -inf
        %991 = vmax.xlane.f32.xlu0 %v990
        %v992 = vpop.xlane.xlu0 %991
        %v993 = vsel %vm980, %v946, -inf
        %994 = vmax.xlane.f32.xlu0 %v993
        %v995 = vpop.xlane.xlu0 %994
        %v996 = vsel %vm976, %v972, -inf
        %997 = vmax.xlane.f32.xlu0 %v996
        %v998 = vpop.xlane.xlu0 %997
        %v999 = vsel %vm980, %v974, -inf
        %1000 = vmax.xlane.f32.xlu0 %v999
        %v1001 = vpop.xlane.xlu0 %1000
        %v1002 = vsub.f32 %v888, %v979
        %v1003 = vsub.f32 %v890, %v983
        %v1004 = vsub.f32 %v916, %v986
        %v1005 = vsub.f32 %v918, %v989
        %v1006 = vsub.f32 %v944, %v992
        %v1007 = vsub.f32 %v946, %v995
        %v1008 = vsub.f32 %v972, %v998
        %v1009 = vsub.f32 %v974, %v1001
        %v1010 = vmul.f32 %v1002, 1.442695
        %v1011 = vpow.pop %v1010
        %v1012 = vmul.f32 %v1003, 1.442695
        %v1013 = vpow.pop %v1012
        %v1014 = vmul.f32 %v1004, 1.442695
        %v1015 = vpow.pop %v1014
        %v1016 = vmul.f32 %v1005, 1.442695
        %v1017 = vpow.pop %v1016
        %v1018 = vmul.f32 %v1006, 1.442695
        %v1019 = vpow.pop %v1018
        %v1020 = vmul.f32 %v1007, 1.442695
        %v1021 = vpow.pop %v1020
        %v1022 = vmul.f32 %v1008, 1.442695
        %v1023 = vpow.pop %v1022
        %v1024 = vmul.f32 %v1009, 1.442695
        %v1025 = vpow.pop %v1024
        %v1026 = vsel %vm976, %v1011, 0.0
        %1027 = vadd.xlane.f32.xlu0 %v1026
        %v1028 = vpop.xlane.xlu0 %1027
        %v1029 = vsel %vm980, %v1013, 0.0
        %1030 = vadd.xlane.f32.xlu0 %v1029
        %v1031 = vpop.xlane.xlu0 %1030
        %v1032 = vsel %vm976, %v1015, 0.0
        %1033 = vadd.xlane.f32.xlu0 %v1032
        %v1034 = vpop.xlane.xlu0 %1033
        %v1035 = vsel %vm980, %v1017, 0.0
        %1036 = vadd.xlane.f32.xlu0 %v1035
        %v1037 = vpop.xlane.xlu0 %1036
        %v1038 = vsel %vm976, %v1019, 0.0
        %1039 = vadd.xlane.f32.xlu0 %v1038
        %v1040 = vpop.xlane.xlu0 %1039
        %v1041 = vsel %vm980, %v1021, 0.0
        %1042 = vadd.xlane.f32.xlu0 %v1041
        %v1043 = vpop.xlane.xlu0 %1042
        %v1044 = vsel %vm976, %v1023, 0.0
        %1045 = vadd.xlane.f32.xlu0 %v1044
        %v1046 = vpop.xlane.xlu0 %1045
        %v1047 = vsel %vm980, %v1025, 0.0
        %1048 = vadd.xlane.f32.xlu0 %v1047
        %v1049 = vpop.xlane.xlu0 %1048
        %v1050 = vrcp.pop %v1028
        %v1051 = vrcp.pop %v1031
        %v1052 = vrcp.pop %v1034
        %v1053 = vrcp.pop %v1037
        %v1054 = vrcp.pop %v1040
        %v1055 = vrcp.pop %v1043
        %v1056 = vrcp.pop %v1046
        %v1057 = vrcp.pop %v1049
        %v1058 = vmul.f32 %v1011, %v1050
        %v1059 = vmul.f32 %v1013, %v1051
        %v1060 = vmul.f32 %v1015, %v1052
        %v1061 = vmul.f32 %v1017, %v1053
        %v1062 = vmul.f32 %v1019, %v1054
        %v1063 = vmul.f32 %v1021, %v1055
        %v1064 = vmul.f32 %v1023, %v1056
        %v1065 = vmul.f32 %v1025, %v1057
        %v1066 = vpack.c.bf16 %v1058, %v1058
        %v1067 = vpack.c.bf16 %v1059, %v1059
        %v1068 = vpack.c.bf16 %v1060, %v1060
        %v1069 = vpack.c.bf16 %v1061, %v1061
        %v1070 = vpack.c.bf16 %v1062, %v1062
        %v1071 = vpack.c.bf16 %v1063, %v1063
        %v1072 = vpack.c.bf16 %v1064, %v1064
        %v1073 = vpack.c.bf16 %v1065, %v1065
        %v1076 = vunpack.c.l.b16 %v1066
        %v1077 = vunpack.c.l.b16 %v1067
        %v1078 = vpack.c.b16 %v1077, %v1076
        %v1079 = vunpack.c.l.b16 %v819
        %v1080 = vunpack.c.l.b16 %v820
        %v1081 = vpack.c.b16 %v1080, %v1079
        %1082 = vrot.lane.b32.xlu0 %v1081, 64
        %v1083 = vpop.permute.xlu0 %1082
        %v1085 = vsel %vm976, %v1078, 0
        %vm1087 = vcmask 1044480
        %v1089 = vsel %vm1087, %v1083, 0
        %1091 = vmatpush.bf16.msra.mxu0 0
        %1092 = vmatpush.bf16.msra.mxu0 0
        %1093 = vmatpush.bf16.msra.mxu0 0
        %1094 = vmatpush.bf16.msra.mxu0 0
        %1095 = vmatpush.bf16.msra.mxu0 0
        %1096 = vmatpush.bf16.msra.mxu0 0
        %1097 = vmatpush.bf16.msra.mxu0 0
        %1098 = vmatpush.bf16.msra.mxu0 %v1089
        %1099 = vmatmul.bf16.gmra.mxu0 %v1085
        %v1100 = vpop.f32.mrf.mxu0
        %v1101 = vadd.f32 0.0, %v1100
        %v1102 = vpop.f32.mrf.mxu0
        %v1103 = vadd.f32 0.0, %v1102
        %1104 = vdwg.mxu0
        %v1107 = vunpack.c.l.b16 %v1068
        %v1108 = vunpack.c.l.b16 %v1069
        %v1109 = vpack.c.b16 %v1108, %v1107
        %v1110 = vunpack.c.l.b16 %v852
        %v1111 = vunpack.c.l.b16 %v854
        %v1112 = vpack.c.b16 %v1111, %v1110
        %1113 = vrot.lane.b32.xlu0 %v1112, 64
        %v1114 = vpop.permute.xlu0 %1113
        %v1116 = vsel %vm976, %v1109, 0
        %v1119 = vsel %vm1087, %v1114, 0
        %1121 = vmatpush.bf16.msra.mxu0 0
        %1122 = vmatpush.bf16.msra.mxu0 0
        %1123 = vmatpush.bf16.msra.mxu0 0
        %1124 = vmatpush.bf16.msra.mxu0 0
        %1125 = vmatpush.bf16.msra.mxu0 0
        %1126 = vmatpush.bf16.msra.mxu0 0
        %1127 = vmatpush.bf16.msra.mxu0 0
        %1128 = vmatpush.bf16.msra.mxu0 %v1119
        %1129 = vmatmul.bf16.gmra.mxu0 %v1116
        %v1130 = vpop.f32.mrf.mxu0
        %v1131 = vadd.f32 0.0, %v1130
        %v1132 = vpop.f32.mrf.mxu0
        %v1133 = vadd.f32 0.0, %v1132
        %1134 = vdwg.mxu0
        %v1137 = vunpack.c.l.b16 %v1070
        %v1138 = vunpack.c.l.b16 %v1071
        %v1139 = vpack.c.b16 %v1138, %v1137
        %v1140 = vunpack.c.l.b16 %v856
        %v1141 = vunpack.c.l.b16 %v858
        %v1142 = vpack.c.b16 %v1141, %v1140
        %1143 = vrot.lane.b32.xlu0 %v1142, 64
        %v1144 = vpop.permute.xlu0 %1143
        %v1146 = vsel %vm976, %v1139, 0
        %v1149 = vsel %vm1087, %v1144, 0
        %1151 = vmatpush.bf16.msra.mxu0 0
        %1152 = vmatpush.bf16.msra.mxu0 0
        %1153 = vmatpush.bf16.msra.mxu0 0
        %1154 = vmatpush.bf16.msra.mxu0 0
        %1155 = vmatpush.bf16.msra.mxu0 0
        %1156 = vmatpush.bf16.msra.mxu0 0
        %1157 = vmatpush.bf16.msra.mxu0 0
        %1158 = vmatpush.bf16.msra.mxu0 %v1149
        %1159 = vmatmul.bf16.gmra.mxu0 %v1146
        %v1160 = vpop.f32.mrf.mxu0
        %v1161 = vadd.f32 0.0, %v1160
        %v1162 = vpop.f32.mrf.mxu0
        %v1163 = vadd.f32 0.0, %v1162
        %1164 = vdwg.mxu0
        %v1167 = vunpack.c.l.b16 %v1072
        %v1168 = vunpack.c.l.b16 %v1073
        %v1169 = vpack.c.b16 %v1168, %v1167
        %v1170 = vunpack.c.l.b16 %v860
        %v1171 = vunpack.c.l.b16 %v862
        %v1172 = vpack.c.b16 %v1171, %v1170
        %1173 = vrot.lane.b32.xlu0 %v1172, 64
        %v1174 = vpop.permute.xlu0 %1173
        %v1176 = vsel %vm976, %v1169, 0
        %v1179 = vsel %vm1087, %v1174, 0
        %1181 = vmatpush.bf16.msra.mxu0 0
        %1182 = vmatpush.bf16.msra.mxu0 0
        %1183 = vmatpush.bf16.msra.mxu0 0
        %1184 = vmatpush.bf16.msra.mxu0 0
        %1185 = vmatpush.bf16.msra.mxu0 0
        %1186 = vmatpush.bf16.msra.mxu0 0
        %1187 = vmatpush.bf16.msra.mxu0 0
        %1188 = vmatpush.bf16.msra.mxu0 %v1179
        %1189 = vmatmul.bf16.gmra.mxu0 %v1176
        %v1190 = vpop.f32.mrf.mxu0
        %v1191 = vadd.f32 0.0, %v1190
        %v1192 = vpop.f32.mrf.mxu0
        %v1193 = vadd.f32 0.0, %v1192
        %1194 = vdwg.mxu0
        %1197 = vrot.lane.b32.xlu0 %v1131, 8
        %v1198 = vpop.permute.xlu0 %1197
        %1199 = vrot.lane.b32.xlu0 %v1133, 8
        %v1200 = vpop.permute.xlu0 %1199
        %1205 = vrot.lane.b32.xlu0 %v1161, 16
        %v1206 = vpop.permute.xlu0 %1205
        %1207 = vrot.lane.b32.xlu0 %v1163, 16
        %v1208 = vpop.permute.xlu0 %1207
        %1213 = vrot.lane.b32.xlu0 %v1191, 24
        %v1214 = vpop.permute.xlu0 %1213
        %1215 = vrot.lane.b32.xlu0 %v1193, 24
        %v1216 = vpop.permute.xlu0 %1215
        %v1219 = vsel %vm871, %v1101, %v1198
        %v1220 = vsel %vm871, %v1103, %v1200
        %vm1221 = vcmask 130048
        %v1222 = vsel %vm1221, %v1219, %v1206
        %v1223 = vsel %vm1221, %v1220, %v1208
        %vm1224 = vcmask 195584
        %v1225 = vsel %vm1224, %v1222, %v1214
        %v1226 = vsel %vm1224, %v1223, %v1216
        %v1227 = vld [vmem:[%s9] sm:$0xf]
        %v1228 = vld [vmem:[%s9 + $0x4] sm:$0xf]
        %v1229 = vld [vmem:[%s9 + $0x8] sm:$0xf]
        %v1230 = vld [vmem:[%s9 + $0xc] sm:$0xf]
        %v1231 = vpack.c.bf16 %v1226, %v1225
        %v1236 = vunpack.c.l.b16 %v1227
        %v1237 = vunpack.c.l.b16 %v1228
        %v1238 = vunpack.c.l.b16 %v1229
        %v1239 = vunpack.c.l.b16 %v1230
        %v1240 = vpack.c.b16 %v1237, %v1236
        %v1241 = vpack.c.b16 %v1239, %v1238
        %v1245 = vsel %vm663, %v1231, 0
        %1247 = vmatpush.bf16.msra.mxu0 0
        %1248 = vmatpush.bf16.msra.mxu0 0
        %1249 = vmatpush.bf16.msra.mxu0 0
        %1250 = vmatpush.bf16.msra.mxu0 0
        %1251 = vmatpush.bf16.msra.mxu0 0
        %1252 = vmatpush.bf16.msra.mxu0 0
        %1253 = vmatpush.bf16.msra.mxu0 %v1241
        %1254 = vmatpush.bf16.msra.mxu0 %v1240
        %1255 = vmatmul.bf16.gmra.mxu0 %v1245
        %v1256 = vpop.f32.mrf.mxu0
        %v1257 = vadd.f32 0.0, %v1256
        %v1258 = vpop.f32.mrf.mxu0
        %v1259 = vadd.f32 0.0, %v1258
        %1260 = vdwg.mxu0
        %v1261 = vadd.f32 %v645, %v1257
        %v1262 = vadd.f32 %v646, %v1259
        %v1263 = vld [vmem:[%s10] sm:$0x1]
        %v1264 = vmul.f32 %v1261, %v1261
        %v1265 = vmul.f32 %v1262, %v1262
        %v1266 = vsel %vm663, %v1264, 0.0
        %1267 = vadd.xlane.f32.xlu0 %v1266
        %v1268 = vpop.xlane.xlu0 %1267
        %v1269 = vsel %vm667, %v1265, 0.0
        %1270 = vadd.xlane.f32.xlu0 %v1269
        %v1271 = vpop.xlane.xlu0 %1270
        %v1272 = vmul.f32 %v1268, %v677
        %v1273 = vmul.f32 %v1271, %v677
        %v1274 = vadd.f32 %v1272, 1e-06
        %v1275 = vadd.f32 %v1273, 1e-06
        %v1276 = vrsqrt.pop %v1274
        %v1277 = vmul.f32 %v1276, %v1274
        %v1278 = vmul.f32 %v1277, %v1276
        %v1279 = vmul.f32 0.5, %v1278
        %v1280 = vsub.f32 1.5, %v1279
        %v1281 = vmul.f32 %v1276, %v1280
        %vm1282 = vweird.f32 %v1274
        %vm1283 = vweird.f32 %v1276
        %vm1284 = vmor %vm1282, %vm1283
        %v1285 = vsel %vm1284, %v1276, %v1281
        %v1286 = vrsqrt.pop %v1275
        %v1287 = vmul.f32 %v1286, %v1275
        %v1288 = vmul.f32 %v1287, %v1286
        %v1289 = vmul.f32 0.5, %v1288
        %v1290 = vsub.f32 1.5, %v1289
        %v1291 = vmul.f32 %v1286, %v1290
        %vm1292 = vweird.f32 %v1275
        %vm1293 = vweird.f32 %v1286
        %vm1294 = vmor %vm1292, %vm1293
        %v1295 = vsel %vm1294, %v1286, %v1291
        %v1296 = vmul.f32 %v1261, %v1285
        %v1297 = vmul.f32 %v1262, %v1295
        %v1299 = vperm.slane %v1263, 0
        %v1301 = vmul.f32 %v1296, %v1299
        %v1302 = vmul.f32 %v1297, %v1299
        %v1303 = vld [vmem:[%s11] sm:$0xf]
        %v1304 = vld [vmem:[%s11 + $0x4] sm:$0xf]
        %v1305 = vld [vmem:[%s11 + $0x8] sm:$0xf]
        %v1306 = vld [vmem:[%s11 + $0xc] sm:$0xf]
        %v1307 = vpack.c.bf16 %v1302, %v1301
        %v1312 = vunpack.c.l.b16 %v1303
        %v1313 = vunpack.c.l.b16 %v1304
        %v1314 = vunpack.c.l.b16 %v1305
        %v1315 = vunpack.c.l.b16 %v1306
        %v1316 = vpack.c.b16 %v1313, %v1312
        %v1317 = vpack.c.b16 %v1315, %v1314
        %v1321 = vsel %vm663, %v1307, 0
        %1323 = vmatpush.bf16.msra.mxu0 0
        %1324 = vmatpush.bf16.msra.mxu0 0
        %1325 = vmatpush.bf16.msra.mxu0 0
        %1326 = vmatpush.bf16.msra.mxu0 0
        %1327 = vmatpush.bf16.msra.mxu0 0
        %1328 = vmatpush.bf16.msra.mxu0 0
        %1329 = vmatpush.bf16.msra.mxu0 %v1317
        %1330 = vmatpush.bf16.msra.mxu0 %v1316
        %1331 = vmatmul.bf16.gmra.mxu0 %v1321
        %v1332 = vpop.f32.mrf.mxu0
        %v1333 = vadd.f32 0.0, %v1332
        %v1334 = vpop.f32.mrf.mxu0
        %v1335 = vadd.f32 0.0, %v1334
        %1336 = vdwg.mxu0
        %v1337 = vxor.u32 %v1333, 2147483648
        %v1338 = vxor.u32 %v1335, 2147483648
        %v1339 = vmul.f32 %v1337, 1.442695
        %v1340 = vpow.pop %v1339
        %v1341 = vmul.f32 %v1338, 1.442695
        %v1342 = vpow.pop %v1341
        %v1343 = vadd.f32 %v1340, 1.0
        %v1344 = vadd.f32 %v1342, 1.0
        %v1345 = vrcp.pop %v1343
        %v1346 = vmul.f32 %v1343, %v1345
        %v1347 = vsub.f32 1.0, %v1346
        %v1348 = vmul.f32 %v1345, %v1347
        %v1349 = vadd.f32 %v1345, %v1348
        %vm1350 = vweird.f32 %v1343
        %vm1351 = vweird.f32 %v1345
        %vm1352 = vmor %vm1350, %vm1351
        %v1353 = vsel %vm1352, %v1345, %v1349
        %v1354 = vand.u32 2147483647, %v1343
        %vm1355 = vcmp.eq.f32.partialorder %v1354, 8.507059e+37
        %v1356 = vand.u32 %v1343, 2147483648
        %v1357 = vor.u32 1.1754944e-38, %v1356
        %v1358 = vsel %vm1355, %v1357, %v1353
        %v1359 = vmul.f32 1.0, %v1358
        %v1360 = vrcp.pop %v1344
        %v1361 = vmul.f32 %v1344, %v1360
        %v1362 = vsub.f32 1.0, %v1361
        %v1363 = vmul.f32 %v1360, %v1362
        %v1364 = vadd.f32 %v1360, %v1363
        %vm1365 = vweird.f32 %v1344
        %vm1366 = vweird.f32 %v1360
        %vm1367 = vmor %vm1365, %vm1366
        %v1368 = vsel %vm1367, %v1360, %v1364
        %v1369 = vand.u32 2147483647, %v1344
        %vm1370 = vcmp.eq.f32.partialorder %v1369, 8.507059e+37
        %v1371 = vand.u32 %v1344, 2147483648
        %v1372 = vor.u32 1.1754944e-38, %v1371
        %v1373 = vsel %vm1370, %v1372, %v1368
        %v1374 = vmul.f32 1.0, %v1373
        %v1375 = vmul.f32 %v1333, %v1359
        %v1376 = vmul.f32 %v1335, %v1374
        %1379 = vrot.lane.b32.xlu0 %v1333, 64
        %v1380 = vpop.permute.xlu0 %1379
        %1381 = vrot.lane.b32.xlu0 %v1335, 64
        %v1382 = vpop.permute.xlu0 %1381
        %v1385 = vmul.f32 %v1375, %v1380
        %v1386 = vmul.f32 %v1376, %v1382
        %v1387 = vld [vmem:[%s12] sm:$0xf]
        %v1388 = vld [vmem:[%s12 + $0x4] sm:$0xf]
        %v1389 = vld [vmem:[%s12 + $0x8] sm:$0xf]
        %v1390 = vld [vmem:[%s12 + $0xc] sm:$0xf]
        %v1391 = vld [vmem:[%s12 + $0x10] sm:$0xf]
        %v1392 = vld [vmem:[%s12 + $0x14] sm:$0xf]
        %v1393 = vld [vmem:[%s12 + $0x18] sm:$0xf]
        %v1394 = vld [vmem:[%s12 + $0x1c] sm:$0xf]
        %v1395 = vpack.c.bf16 %v1386, %v1385
        %v1404 = vunpack.c.l.b16 %v1387
        %v1405 = vunpack.c.l.b16 %v1388
        %v1406 = vunpack.c.l.b16 %v1389
        %v1407 = vunpack.c.l.b16 %v1390
        %v1408 = vunpack.c.l.b16 %v1391
        %v1409 = vunpack.c.l.b16 %v1392
        %v1410 = vunpack.c.l.b16 %v1393
        %v1411 = vunpack.c.l.b16 %v1394
        %v1412 = vpack.c.b16 %v1405, %v1404
        %v1413 = vpack.c.b16 %v1407, %v1406
        %v1414 = vpack.c.b16 %v1409, %v1408
        %v1415 = vpack.c.b16 %v1411, %v1410
        %vm1420 = vcmask 523264
        %v1422 = vsel %vm1420, %v1395, 0
        %1424 = vmatpush.bf16.msra.mxu0 0
        %1425 = vmatpush.bf16.msra.mxu0 0
        %1426 = vmatpush.bf16.msra.mxu0 0
        %1427 = vmatpush.bf16.msra.mxu0 0
        %1428 = vmatpush.bf16.msra.mxu0 %v1415
        %1429 = vmatpush.bf16.msra.mxu0 %v1414
        %1430 = vmatpush.bf16.msra.mxu0 %v1413
        %1431 = vmatpush.bf16.msra.mxu0 %v1412
        %1432 = vmatmul.bf16.gmra.mxu0 %v1422
        %v1433 = vpop.f32.mrf.mxu0
        %v1434 = vadd.f32 0.0, %v1433
        %v1435 = vpop.f32.mrf.mxu0
        %v1436 = vadd.f32 0.0, %v1435
        %1437 = vdwg.mxu0
        %v1438 = vadd.f32 %v1261, %v1434
        %v1439 = vadd.f32 %v1262, %v1436
        %s1440 = scalar_lea.vmem %s6, 1
        %v1441 = vld [vmem:[%s1440] sm:$0x1]
        %v1442 = vmul.f32 %v1438, %v1438
        %v1443 = vmul.f32 %v1439, %v1439
        %v1444 = vsel %vm663, %v1442, 0.0
        %1445 = vadd.xlane.f32.xlu0 %v1444
        %v1446 = vpop.xlane.xlu0 %1445
        %v1447 = vsel %vm667, %v1443, 0.0
        %1448 = vadd.xlane.f32.xlu0 %v1447
        %v1449 = vpop.xlane.xlu0 %1448
        %v1450 = vmul.f32 %v1446, %v677
        %v1451 = vmul.f32 %v1449, %v677
        %v1452 = vadd.f32 %v1450, 1e-06
        %v1453 = vadd.f32 %v1451, 1e-06
        %v1454 = vrsqrt.pop %v1452
        %v1455 = vmul.f32 %v1454, %v1452
        %v1456 = vmul.f32 %v1455, %v1454
        %v1457 = vmul.f32 0.5, %v1456
        %v1458 = vsub.f32 1.5, %v1457
        %v1459 = vmul.f32 %v1454, %v1458
        %vm1460 = vweird.f32 %v1452
        %vm1461 = vweird.f32 %v1454
        %vm1462 = vmor %vm1460, %vm1461
        %v1463 = vsel %vm1462, %v1454, %v1459
        %v1464 = vrsqrt.pop %v1453
        %v1465 = vmul.f32 %v1464, %v1453
        %v1466 = vmul.f32 %v1465, %v1464
        %v1467 = vmul.f32 0.5, %v1466
        %v1468 = vsub.f32 1.5, %v1467
        %v1469 = vmul.f32 %v1464, %v1468
        %vm1470 = vweird.f32 %v1453
        %vm1471 = vweird.f32 %v1464
        %vm1472 = vmor %vm1470, %vm1471
        %v1473 = vsel %vm1472, %v1464, %v1469
        %v1474 = vmul.f32 %v1438, %v1463
        %v1475 = vmul.f32 %v1439, %v1473
        %v1477 = vperm.slane %v1441, 0
        %v1479 = vmul.f32 %v1474, %v1477
        %v1480 = vmul.f32 %v1475, %v1477
        %s1481 = scalar_lea.vmem %s7, 32
        %v1482 = vld [vmem:[%s1481] sm:$0xff]
        %v1483 = vld [vmem:[%s1481 + $0x8] sm:$0xff]
        %v1484 = vld [vmem:[%s1481 + $0x10] sm:$0xff]
        %v1485 = vld [vmem:[%s1481 + $0x18] sm:$0xff]
        %v1486 = vpack.c.bf16 %v1480, %v1479
        %s1487 = scalar_lea.vmem %s8, 2
        %v1488 = vld [vmem:[%s1487] sm:$0x3]
        %v1490 = vperm.slane %v1488, 0
        %v1491 = vperm.slane %v1488, 1
        %v1498 = vunpack.c.l.b16 %v1482
        %v1499 = vunpack.c.h.b16 %v1482
        %v1500 = vunpack.c.l.b16 %v1483
        %v1501 = vunpack.c.h.b16 %v1483
        %v1502 = vunpack.c.l.b16 %v1484
        %v1503 = vunpack.c.h.b16 %v1484
        %v1504 = vunpack.c.l.b16 %v1485
        %v1505 = vunpack.c.h.b16 %v1485
        %v1506 = vpack.c.b16 %v1500, %v1498
        %v1507 = vpack.c.b16 %v1501, %v1499
        %v1508 = vpack.c.b16 %v1504, %v1502
        %v1509 = vpack.c.b16 %v1505, %v1503
        %v1515 = vsel %vm663, %v1486, 0
        %1517 = vmatpush.bf16.msra.mxu0 0
        %1518 = vmatpush.bf16.msra.mxu0 0
        %1519 = vmatpush.bf16.msra.mxu0 0
        %1520 = vmatpush.bf16.msra.mxu0 0
        %1521 = vmatpush.bf16.msra.mxu0 0
        %1522 = vmatpush.bf16.msra.mxu0 0
        %1523 = vmatpush.bf16.msra.mxu0 %v1508
        %1524 = vmatpush.bf16.msra.mxu0 %v1506
        %1525 = vmatmul.bf16.gmra.mxu0 %v1515
        %v1526 = vpop.f32.mrf.mxu0
        %v1527 = vadd.f32 %v1490, %v1526
        %v1528 = vpop.f32.mrf.mxu0
        %v1529 = vadd.f32 %v1490, %v1528
        %1530 = vdwg.mxu0
        %1531 = vmatpush.bf16.msra.mxu0 0
        %1532 = vmatpush.bf16.msra.mxu0 0
        %1533 = vmatpush.bf16.msra.mxu0 0
        %1534 = vmatpush.bf16.msra.mxu0 0
        %1535 = vmatpush.bf16.msra.mxu0 0
        %1536 = vmatpush.bf16.msra.mxu0 0
        %1537 = vmatpush.bf16.msra.mxu0 %v1509
        %1538 = vmatpush.bf16.msra.mxu0 %v1507
        %1539 = vmatmul.bf16.gmra.mxu0 %v1515
        %v1540 = vpop.f32.mrf.mxu0
        %v1541 = vadd.f32 %v1491, %v1540
        %v1542 = vpop.f32.mrf.mxu0
        %v1543 = vadd.f32 %v1491, %v1542
        %1544 = vdwg.mxu0
        %v1545 = vmul.f32 %v1527, %v647
        %v1546 = vmul.f32 %v1529, %v648
        %v1547 = vmul.f32 %v1527, %v776
        %v1548 = vmul.f32 %v1529, %v778
        %1551 = vrot.lane.b32.xlu0 %v1547, 32
        %v1552 = vpop.permute.xlu0 %1551
        %1553 = vrot.lane.b32.xlu0 %v1548, 32
        %v1554 = vpop.permute.xlu0 %1553
        %v1557 = vadd.f32 %v1545, %v1552
        %v1558 = vadd.f32 %v1546, %v1554
        %v1559 = vpack.c.bf16 %v1557, %v1557
        %v1560 = vpack.c.bf16 %v1558, %v1558
        %v1561 = vmul.f32 %v1527, %v798
        %v1562 = vmul.f32 %v1529, %v800
        %v1563 = vmul.f32 %v1541, %v649
        %v1564 = vmul.f32 %v1543, %v650
        %1567 = vrot.lane.b32.xlu0 %v1563, 32
        %v1568 = vpop.permute.xlu0 %1567
        %1569 = vrot.lane.b32.xlu0 %v1564, 32
        %v1570 = vpop.permute.xlu0 %1569
        %v1573 = vadd.f32 %v1561, %v1568
        %v1574 = vadd.f32 %v1562, %v1570
        %v1575 = vpack.c.bf16 %v1573, %v1573
        %v1576 = vpack.c.bf16 %v1574, %v1574
        %v1577 = vpack.c.bf16 %v1527, %v1527
        %v1578 = vpack.c.bf16 %v1529, %v1529
        %1581 = vrot.lane.b32.xlu0 %v1559, 120
        %v1582 = vpop.permute.xlu0 %1581
        %1583 = vrot.lane.b32.xlu0 %v1560, 120
        %v1584 = vpop.permute.xlu0 %1583
        %1585 = vrot.lane.b32.xlu0 %v1559, 112
        %v1586 = vpop.permute.xlu0 %1585
        %1587 = vrot.lane.b32.xlu0 %v1560, 112
        %v1588 = vpop.permute.xlu0 %1587
        %1589 = vrot.lane.b32.xlu0 %v1559, 104
        %v1590 = vpop.permute.xlu0 %1589
        %1591 = vrot.lane.b32.xlu0 %v1560, 104
        %v1592 = vpop.permute.xlu0 %1591
        %1595 = vrot.lane.b32.xlu0 %v1575, 120
        %v1596 = vpop.permute.xlu0 %1595
        %1597 = vrot.lane.b32.xlu0 %v1576, 120
        %v1598 = vpop.permute.xlu0 %1597
        %1599 = vrot.lane.b32.xlu0 %v1575, 112
        %v1600 = vpop.permute.xlu0 %1599
        %1601 = vrot.lane.b32.xlu0 %v1576, 112
        %v1602 = vpop.permute.xlu0 %1601
        %1603 = vrot.lane.b32.xlu0 %v1575, 104
        %v1604 = vpop.permute.xlu0 %1603
        %1605 = vrot.lane.b32.xlu0 %v1576, 104
        %v1606 = vpop.permute.xlu0 %1605
        %1609 = vrot.lane.b32.xlu0 %v1577, 120
        %v1610 = vpop.permute.xlu0 %1609
        %1611 = vrot.lane.b32.xlu0 %v1578, 120
        %v1612 = vpop.permute.xlu0 %1611
        %1613 = vrot.lane.b32.xlu0 %v1577, 112
        %v1614 = vpop.permute.xlu0 %1613
        %1615 = vrot.lane.b32.xlu0 %v1578, 112
        %v1616 = vpop.permute.xlu0 %1615
        %1617 = vrot.lane.b32.xlu0 %v1577, 104
        %v1618 = vpop.permute.xlu0 %1617
        %1619 = vrot.lane.b32.xlu0 %v1578, 104
        %v1620 = vpop.permute.xlu0 %1619
        %v1621 = vunpack.c.l.b16 %v1559
        %v1622 = vunpack.c.l.b16 %v1560
        %v1623 = vpack.c.b16 %v1622, %v1621
        %v1624 = vunpack.c.l.b16 %v1575
        %v1625 = vunpack.c.l.b16 %v1576
        %v1626 = vpack.c.b16 %v1625, %v1624
        %1627 = vrot.lane.b32.xlu0 %v1626, 96
        %v1628 = vpop.permute.xlu0 %1627
        %v1630 = vsel %vm871, %v1623, 0
        %v1633 = vsel %vm871, %v1628, 0
        %1635 = vmatpush.bf16.xpose.msra.mxu0 0
        %1636 = vmatpush.bf16.xpose.msra.mxu0 0
        %1637 = vmatpush.bf16.xpose.msra.mxu0 0
        %1638 = vmatpush.bf16.xpose.msra.mxu0 0
        %1639 = vmatpush.bf16.xpose.msra.mxu0 0
        %1640 = vmatpush.bf16.xpose.msra.mxu0 0
        %1641 = vmatpush.bf16.xpose.msra.mxu0 0
        %1642 = vmatpush.bf16.xpose.msra.mxu0 %v1633
        %1643 = vmatmul.bf16.gmra.mxu0 %v1630
        %v1644 = vpop.f32.mrf.mxu0
        %v1645 = vadd.f32 %v658, %v1644
        %v1646 = vpop.f32.mrf.mxu0
        %v1647 = vadd.f32 %v659, %v1646
        %1648 = vdwg.mxu0
        %v1649 = vunpack.c.l.b16 %v1582
        %v1650 = vunpack.c.l.b16 %v1584
        %v1651 = vpack.c.b16 %v1650, %v1649
        %v1652 = vunpack.c.l.b16 %v1596
        %v1653 = vunpack.c.l.b16 %v1598
        %v1654 = vpack.c.b16 %v1653, %v1652
        %1655 = vrot.lane.b32.xlu0 %v1654, 96
        %v1656 = vpop.permute.xlu0 %1655
        %v1658 = vsel %vm871, %v1651, 0
        %v1661 = vsel %vm871, %v1656, 0
        %1663 = vmatpush.bf16.xpose.msra.mxu0 0
        %1664 = vmatpush.bf16.xpose.msra.mxu0 0
        %1665 = vmatpush.bf16.xpose.msra.mxu0 0
        %1666 = vmatpush.bf16.xpose.msra.mxu0 0
        %1667 = vmatpush.bf16.xpose.msra.mxu0 0
        %1668 = vmatpush.bf16.xpose.msra.mxu0 0
        %1669 = vmatpush.bf16.xpose.msra.mxu0 0
        %1670 = vmatpush.bf16.xpose.msra.mxu0 %v1661
        %1671 = vmatmul.bf16.gmra.mxu0 %v1658
        %v1672 = vpop.f32.mrf.mxu0
        %v1673 = vadd.f32 %v658, %v1672
        %v1674 = vpop.f32.mrf.mxu0
        %v1675 = vadd.f32 %v659, %v1674
        %1676 = vdwg.mxu0
        %v1677 = vunpack.c.l.b16 %v1586
        %v1678 = vunpack.c.l.b16 %v1588
        %v1679 = vpack.c.b16 %v1678, %v1677
        %v1680 = vunpack.c.l.b16 %v1600
        %v1681 = vunpack.c.l.b16 %v1602
        %v1682 = vpack.c.b16 %v1681, %v1680
        %1683 = vrot.lane.b32.xlu0 %v1682, 96
        %v1684 = vpop.permute.xlu0 %1683
        %v1686 = vsel %vm871, %v1679, 0
        %v1689 = vsel %vm871, %v1684, 0
        %1691 = vmatpush.bf16.xpose.msra.mxu0 0
        %1692 = vmatpush.bf16.xpose.msra.mxu0 0
        %1693 = vmatpush.bf16.xpose.msra.mxu0 0
        %1694 = vmatpush.bf16.xpose.msra.mxu0 0
        %1695 = vmatpush.bf16.xpose.msra.mxu0 0
        %1696 = vmatpush.bf16.xpose.msra.mxu0 0
        %1697 = vmatpush.bf16.xpose.msra.mxu0 0
        %1698 = vmatpush.bf16.xpose.msra.mxu0 %v1689
        %1699 = vmatmul.bf16.gmra.mxu0 %v1686
        %v1700 = vpop.f32.mrf.mxu0
        %v1701 = vadd.f32 %v658, %v1700
        %v1702 = vpop.f32.mrf.mxu0
        %v1703 = vadd.f32 %v659, %v1702
        %1704 = vdwg.mxu0
        %v1705 = vunpack.c.l.b16 %v1590
        %v1706 = vunpack.c.l.b16 %v1592
        %v1707 = vpack.c.b16 %v1706, %v1705
        %v1708 = vunpack.c.l.b16 %v1604
        %v1709 = vunpack.c.l.b16 %v1606
        %v1710 = vpack.c.b16 %v1709, %v1708
        %1711 = vrot.lane.b32.xlu0 %v1710, 96
        %v1712 = vpop.permute.xlu0 %1711
        %v1714 = vsel %vm871, %v1707, 0
        %v1717 = vsel %vm871, %v1712, 0
        %1719 = vmatpush.bf16.xpose.msra.mxu0 0
        %1720 = vmatpush.bf16.xpose.msra.mxu0 0
        %1721 = vmatpush.bf16.xpose.msra.mxu0 0
        %1722 = vmatpush.bf16.xpose.msra.mxu0 0
        %1723 = vmatpush.bf16.xpose.msra.mxu0 0
        %1724 = vmatpush.bf16.xpose.msra.mxu0 0
        %1725 = vmatpush.bf16.xpose.msra.mxu0 0
        %1726 = vmatpush.bf16.xpose.msra.mxu0 %v1717
        %1727 = vmatmul.bf16.gmra.mxu0 %v1714
        %v1728 = vpop.f32.mrf.mxu0
        %v1729 = vadd.f32 %v658, %v1728
        %v1730 = vpop.f32.mrf.mxu0
        %v1731 = vadd.f32 %v659, %v1730
        %1732 = vdwg.mxu0
        %v1733 = vsel %vm976, %v1645, -inf
        %1734 = vmax.xlane.f32.xlu0 %v1733
        %v1735 = vpop.xlane.xlu0 %1734
        %v1736 = vsel %vm980, %v1647, -inf
        %1737 = vmax.xlane.f32.xlu0 %v1736
        %v1738 = vpop.xlane.xlu0 %1737
        %v1739 = vsel %vm976, %v1673, -inf
        %1740 = vmax.xlane.f32.xlu0 %v1739
        %v1741 = vpop.xlane.xlu0 %1740
        %v1742 = vsel %vm980, %v1675, -inf
        %1743 = vmax.xlane.f32.xlu0 %v1742
        %v1744 = vpop.xlane.xlu0 %1743
        %v1745 = vsel %vm976, %v1701, -inf
        %1746 = vmax.xlane.f32.xlu0 %v1745
        %v1747 = vpop.xlane.xlu0 %1746
        %v1748 = vsel %vm980, %v1703, -inf
        %1749 = vmax.xlane.f32.xlu0 %v1748
        %v1750 = vpop.xlane.xlu0 %1749
        %v1751 = vsel %vm976, %v1729, -inf
        %1752 = vmax.xlane.f32.xlu0 %v1751
        %v1753 = vpop.xlane.xlu0 %1752
        %v1754 = vsel %vm980, %v1731, -inf
        %1755 = vmax.xlane.f32.xlu0 %v1754
        %v1756 = vpop.xlane.xlu0 %1755
        %v1757 = vsub.f32 %v1645, %v1735
        %v1758 = vsub.f32 %v1647, %v1738
        %v1759 = vsub.f32 %v1673, %v1741
        %v1760 = vsub.f32 %v1675, %v1744
        %v1761 = vsub.f32 %v1701, %v1747
        %v1762 = vsub.f32 %v1703, %v1750
        %v1763 = vsub.f32 %v1729, %v1753
        %v1764 = vsub.f32 %v1731, %v1756
        %v1765 = vmul.f32 %v1757, 1.442695
        %v1766 = vpow.pop %v1765
        %v1767 = vmul.f32 %v1758, 1.442695
        %v1768 = vpow.pop %v1767
        %v1769 = vmul.f32 %v1759, 1.442695
        %v1770 = vpow.pop %v1769
        %v1771 = vmul.f32 %v1760, 1.442695
        %v1772 = vpow.pop %v1771
        %v1773 = vmul.f32 %v1761, 1.442695
        %v1774 = vpow.pop %v1773
        %v1775 = vmul.f32 %v1762, 1.442695
        %v1776 = vpow.pop %v1775
        %v1777 = vmul.f32 %v1763, 1.442695
        %v1778 = vpow.pop %v1777
        %v1779 = vmul.f32 %v1764, 1.442695
        %v1780 = vpow.pop %v1779
        %v1781 = vsel %vm976, %v1766, 0.0
        %1782 = vadd.xlane.f32.xlu0 %v1781
        %v1783 = vpop.xlane.xlu0 %1782
        %v1784 = vsel %vm980, %v1768, 0.0
        %1785 = vadd.xlane.f32.xlu0 %v1784
        %v1786 = vpop.xlane.xlu0 %1785
        %v1787 = vsel %vm976, %v1770, 0.0
        %1788 = vadd.xlane.f32.xlu0 %v1787
        %v1789 = vpop.xlane.xlu0 %1788
        %v1790 = vsel %vm980, %v1772, 0.0
        %1791 = vadd.xlane.f32.xlu0 %v1790
        %v1792 = vpop.xlane.xlu0 %1791
        %v1793 = vsel %vm976, %v1774, 0.0
        %1794 = vadd.xlane.f32.xlu0 %v1793
        %v1795 = vpop.xlane.xlu0 %1794
        %v1796 = vsel %vm980, %v1776, 0.0
        %1797 = vadd.xlane.f32.xlu0 %v1796
        %v1798 = vpop.xlane.xlu0 %1797
        %v1799 = vsel %vm976, %v1778, 0.0
        %1800 = vadd.xlane.f32.xlu0 %v1799
        %v1801 = vpop.xlane.xlu0 %1800
        %v1802 = vsel %vm980, %v1780, 0.0
        %1803 = vadd.xlane.f32.xlu0 %v1802
        %v1804 = vpop.xlane.xlu0 %1803
        %v1805 = vrcp.pop %v1783
        %v1806 = vrcp.pop %v1786
        %v1807 = vrcp.pop %v1789
        %v1808 = vrcp.pop %v1792
        %v1809 = vrcp.pop %v1795
        %v1810 = vrcp.pop %v1798
        %v1811 = vrcp.pop %v1801
        %v1812 = vrcp.pop %v1804
        %v1813 = vmul.f32 %v1766, %v1805
        %v1814 = vmul.f32 %v1768, %v1806
        %v1815 = vmul.f32 %v1770, %v1807
        %v1816 = vmul.f32 %v1772, %v1808
        %v1817 = vmul.f32 %v1774, %v1809
        %v1818 = vmul.f32 %v1776, %v1810
        %v1819 = vmul.f32 %v1778, %v1811
        %v1820 = vmul.f32 %v1780, %v1812
        %v1821 = vpack.c.bf16 %v1813, %v1813
        %v1822 = vpack.c.bf16 %v1814, %v1814
        %v1823 = vpack.c.bf16 %v1815, %v1815
        %v1824 = vpack.c.bf16 %v1816, %v1816
        %v1825 = vpack.c.bf16 %v1817, %v1817
        %v1826 = vpack.c.bf16 %v1818, %v1818
        %v1827 = vpack.c.bf16 %v1819, %v1819
        %v1828 = vpack.c.bf16 %v1820, %v1820
        %v1831 = vunpack.c.l.b16 %v1821
        %v1832 = vunpack.c.l.b16 %v1822
        %v1833 = vpack.c.b16 %v1832, %v1831
        %v1834 = vunpack.c.l.b16 %v1577
        %v1835 = vunpack.c.l.b16 %v1578
        %v1836 = vpack.c.b16 %v1835, %v1834
        %1837 = vrot.lane.b32.xlu0 %v1836, 64
        %v1838 = vpop.permute.xlu0 %1837
        %v1840 = vsel %vm976, %v1833, 0
        %v1843 = vsel %vm1087, %v1838, 0
        %1845 = vmatpush.bf16.msra.mxu0 0
        %1846 = vmatpush.bf16.msra.mxu0 0
        %1847 = vmatpush.bf16.msra.mxu0 0
        %1848 = vmatpush.bf16.msra.mxu0 0
        %1849 = vmatpush.bf16.msra.mxu0 0
        %1850 = vmatpush.bf16.msra.mxu0 0
        %1851 = vmatpush.bf16.msra.mxu0 0
        %1852 = vmatpush.bf16.msra.mxu0 %v1843
        %1853 = vmatmul.bf16.gmra.mxu0 %v1840
        %v1854 = vpop.f32.mrf.mxu0
        %v1855 = vadd.f32 0.0, %v1854
        %v1856 = vpop.f32.mrf.mxu0
        %v1857 = vadd.f32 0.0, %v1856
        %1858 = vdwg.mxu0
        %v1861 = vunpack.c.l.b16 %v1823
        %v1862 = vunpack.c.l.b16 %v1824
        %v1863 = vpack.c.b16 %v1862, %v1861
        %v1864 = vunpack.c.l.b16 %v1610
        %v1865 = vunpack.c.l.b16 %v1612
        %v1866 = vpack.c.b16 %v1865, %v1864
        %1867 = vrot.lane.b32.xlu0 %v1866, 64
        %v1868 = vpop.permute.xlu0 %1867
        %v1870 = vsel %vm976, %v1863, 0
        %v1873 = vsel %vm1087, %v1868, 0
        %1875 = vmatpush.bf16.msra.mxu0 0
        %1876 = vmatpush.bf16.msra.mxu0 0
        %1877 = vmatpush.bf16.msra.mxu0 0
        %1878 = vmatpush.bf16.msra.mxu0 0
        %1879 = vmatpush.bf16.msra.mxu0 0
        %1880 = vmatpush.bf16.msra.mxu0 0
        %1881 = vmatpush.bf16.msra.mxu0 0
        %1882 = vmatpush.bf16.msra.mxu0 %v1873
        %1883 = vmatmul.bf16.gmra.mxu0 %v1870
        %v1884 = vpop.f32.mrf.mxu0
        %v1885 = vadd.f32 0.0, %v1884
        %v1886 = vpop.f32.mrf.mxu0
        %v1887 = vadd.f32 0.0, %v1886
        %1888 = vdwg.mxu0
        %v1891 = vunpack.c.l.b16 %v1825
        %v1892 = vunpack.c.l.b16 %v1826
        %v1893 = vpack.c.b16 %v1892, %v1891
        %v1894 = vunpack.c.l.b16 %v1614
        %v1895 = vunpack.c.l.b16 %v1616
        %v1896 = vpack.c.b16 %v1895, %v1894
        %1897 = vrot.lane.b32.xlu0 %v1896, 64
        %v1898 = vpop.permute.xlu0 %1897
        %v1900 = vsel %vm976, %v1893, 0
        %v1903 = vsel %vm1087, %v1898, 0
        %1905 = vmatpush.bf16.msra.mxu0 0
        %1906 = vmatpush.bf16.msra.mxu0 0
        %1907 = vmatpush.bf16.msra.mxu0 0
        %1908 = vmatpush.bf16.msra.mxu0 0
        %1909 = vmatpush.bf16.msra.mxu0 0
        %1910 = vmatpush.bf16.msra.mxu0 0
        %1911 = vmatpush.bf16.msra.mxu0 0
        %1912 = vmatpush.bf16.msra.mxu0 %v1903
        %1913 = vmatmul.bf16.gmra.mxu0 %v1900
        %v1914 = vpop.f32.mrf.mxu0
        %v1915 = vadd.f32 0.0, %v1914
        %v1916 = vpop.f32.mrf.mxu0
        %v1917 = vadd.f32 0.0, %v1916
        %1918 = vdwg.mxu0
        %v1921 = vunpack.c.l.b16 %v1827
        %v1922 = vunpack.c.l.b16 %v1828
        %v1923 = vpack.c.b16 %v1922, %v1921
        %v1924 = vunpack.c.l.b16 %v1618
        %v1925 = vunpack.c.l.b16 %v1620
        %v1926 = vpack.c.b16 %v1925, %v1924
        %1927 = vrot.lane.b32.xlu0 %v1926, 64
        %v1928 = vpop.permute.xlu0 %1927
        %v1930 = vsel %vm976, %v1923, 0
        %v1933 = vsel %vm1087, %v1928, 0
        %1935 = vmatpush.bf16.msra.mxu0 0
        %1936 = vmatpush.bf16.msra.mxu0 0
        %1937 = vmatpush.bf16.msra.mxu0 0
        %1938 = vmatpush.bf16.msra.mxu0 0
        %1939 = vmatpush.bf16.msra.mxu0 0
        %1940 = vmatpush.bf16.msra.mxu0 0
        %1941 = vmatpush.bf16.msra.mxu0 0
        %1942 = vmatpush.bf16.msra.mxu0 %v1933
        %1943 = vmatmul.bf16.gmra.mxu0 %v1930
        %v1944 = vpop.f32.mrf.mxu0
        %v1945 = vadd.f32 0.0, %v1944
        %v1946 = vpop.f32.mrf.mxu0
        %v1947 = vadd.f32 0.0, %v1946
        %1948 = vdwg.mxu0
        %1951 = vrot.lane.b32.xlu0 %v1885, 8
        %v1952 = vpop.permute.xlu0 %1951
        %1953 = vrot.lane.b32.xlu0 %v1887, 8
        %v1954 = vpop.permute.xlu0 %1953
        %1959 = vrot.lane.b32.xlu0 %v1915, 16
        %v1960 = vpop.permute.xlu0 %1959
        %1961 = vrot.lane.b32.xlu0 %v1917, 16
        %v1962 = vpop.permute.xlu0 %1961
        %1967 = vrot.lane.b32.xlu0 %v1945, 24
        %v1968 = vpop.permute.xlu0 %1967
        %1969 = vrot.lane.b32.xlu0 %v1947, 24
        %v1970 = vpop.permute.xlu0 %1969
        %v1973 = vsel %vm871, %v1855, %v1952
        %v1974 = vsel %vm871, %v1857, %v1954
        %v1975 = vsel %vm1221, %v1973, %v1960
        %v1976 = vsel %vm1221, %v1974, %v1962
        %v1977 = vsel %vm1224, %v1975, %v1968
        %v1978 = vsel %vm1224, %v1976, %v1970
        %s1979 = scalar_lea.vmem %s9, 16
        %v1980 = vld [vmem:[%s1979] sm:$0xf]
        %v1981 = vld [vmem:[%s1979 + $0x4] sm:$0xf]
        %v1982 = vld [vmem:[%s1979 + $0x8] sm:$0xf]
        %v1983 = vld [vmem:[%s1979 + $0xc] sm:$0xf]
        %v1984 = vpack.c.bf16 %v1978, %v1977
        %v1989 = vunpack.c.l.b16 %v1980
        %v1990 = vunpack.c.l.b16 %v1981
        %v1991 = vunpack.c.l.b16 %v1982
        %v1992 = vunpack.c.l.b16 %v1983
        %v1993 = vpack.c.b16 %v1990, %v1989
        %v1994 = vpack.c.b16 %v1992, %v1991
        %v1998 = vsel %vm663, %v1984, 0
        %2000 = vmatpush.bf16.msra.mxu0 0
        %2001 = vmatpush.bf16.msra.mxu0 0
        %2002 = vmatpush.bf16.msra.mxu0 0
        %2003 = vmatpush.bf16.msra.mxu0 0
        %2004 = vmatpush.bf16.msra.mxu0 0
        %2005 = vmatpush.bf16.msra.mxu0 0
        %2006 = vmatpush.bf16.msra.mxu0 %v1994
        %2007 = vmatpush.bf16.msra.mxu0 %v1993
        %2008 = vmatmul.bf16.gmra.mxu0 %v1998
        %v2009 = vpop.f32.mrf.mxu0
        %v2010 = vadd.f32 0.0, %v2009
        %v2011 = vpop.f32.mrf.mxu0
        %v2012 = vadd.f32 0.0, %v2011
        %2013 = vdwg.mxu0
        %v2014 = vadd.f32 %v1438, %v2010
        %v2015 = vadd.f32 %v1439, %v2012
        %s2016 = scalar_lea.vmem %s10, 1
        %v2017 = vld [vmem:[%s2016] sm:$0x1]
        %v2018 = vmul.f32 %v2014, %v2014
        %v2019 = vmul.f32 %v2015, %v2015
        %v2020 = vsel %vm663, %v2018, 0.0
        %2021 = vadd.xlane.f32.xlu0 %v2020
        %v2022 = vpop.xlane.xlu0 %2021
        %v2023 = vsel %vm667, %v2019, 0.0
        %2024 = vadd.xlane.f32.xlu0 %v2023
        %v2025 = vpop.xlane.xlu0 %2024
        %v2026 = vmul.f32 %v2022, %v677
        %v2027 = vmul.f32 %v2025, %v677
        %v2028 = vadd.f32 %v2026, 1e-06
        %v2029 = vadd.f32 %v2027, 1e-06
        %v2030 = vrsqrt.pop %v2028
        %v2031 = vmul.f32 %v2030, %v2028
        %v2032 = vmul.f32 %v2031, %v2030
        %v2033 = vmul.f32 0.5, %v2032
        %v2034 = vsub.f32 1.5, %v2033
        %v2035 = vmul.f32 %v2030, %v2034
        %vm2036 = vweird.f32 %v2028
        %vm2037 = vweird.f32 %v2030
        %vm2038 = vmor %vm2036, %vm2037
        %v2039 = vsel %vm2038, %v2030, %v2035
        %v2040 = vrsqrt.pop %v2029
        %v2041 = vmul.f32 %v2040, %v2029
        %v2042 = vmul.f32 %v2041, %v2040
        %v2043 = vmul.f32 0.5, %v2042
        %v2044 = vsub.f32 1.5, %v2043
        %v2045 = vmul.f32 %v2040, %v2044
        %vm2046 = vweird.f32 %v2029
        %vm2047 = vweird.f32 %v2040
        %vm2048 = vmor %vm2046, %vm2047
        %v2049 = vsel %vm2048, %v2040, %v2045
        %v2050 = vmul.f32 %v2014, %v2039
        %v2051 = vmul.f32 %v2015, %v2049
        %v2053 = vperm.slane %v2017, 0
        %v2055 = vmul.f32 %v2050, %v2053
        %v2056 = vmul.f32 %v2051, %v2053
        %s2057 = scalar_lea.vmem %s11, 16
        %v2058 = vld [vmem:[%s2057] sm:$0xf]
        %v2059 = vld [vmem:[%s2057 + $0x4] sm:$0xf]
        %v2060 = vld [vmem:[%s2057 + $0x8] sm:$0xf]
        %v2061 = vld [vmem:[%s2057 + $0xc] sm:$0xf]
        %v2062 = vpack.c.bf16 %v2056, %v2055
        %v2067 = vunpack.c.l.b16 %v2058
        %v2068 = vunpack.c.l.b16 %v2059
        %v2069 = vunpack.c.l.b16 %v2060
        %v2070 = vunpack.c.l.b16 %v2061
        %v2071 = vpack.c.b16 %v2068, %v2067
        %v2072 = vpack.c.b16 %v2070, %v2069
        %v2076 = vsel %vm663, %v2062, 0
        %2078 = vmatpush.bf16.msra.mxu0 0
        %2079 = vmatpush.bf16.msra.mxu0 0
        %2080 = vmatpush.bf16.msra.mxu0 0
        %2081 = vmatpush.bf16.msra.mxu0 0
        %2082 = vmatpush.bf16.msra.mxu0 0
        %2083 = vmatpush.bf16.msra.mxu0 0
        %2084 = vmatpush.bf16.msra.mxu0 %v2072
        %2085 = vmatpush.bf16.msra.mxu0 %v2071
        %2086 = vmatmul.bf16.gmra.mxu0 %v2076
        %v2087 = vpop.f32.mrf.mxu0
        %v2088 = vadd.f32 0.0, %v2087
        %v2089 = vpop.f32.mrf.mxu0
        %v2090 = vadd.f32 0.0, %v2089
        %2091 = vdwg.mxu0
        %v2092 = vxor.u32 %v2088, 2147483648
        %v2093 = vxor.u32 %v2090, 2147483648
        %v2094 = vmul.f32 %v2092, 1.442695
        %v2095 = vpow.pop %v2094
        %v2096 = vmul.f32 %v2093, 1.442695
        %v2097 = vpow.pop %v2096
        %v2098 = vadd.f32 %v2095, 1.0
        %v2099 = vadd.f32 %v2097, 1.0
        %v2100 = vrcp.pop %v2098
        %v2101 = vmul.f32 %v2098, %v2100
        %v2102 = vsub.f32 1.0, %v2101
        %v2103 = vmul.f32 %v2100, %v2102
        %v2104 = vadd.f32 %v2100, %v2103
        %vm2105 = vweird.f32 %v2098
        %vm2106 = vweird.f32 %v2100
        %vm2107 = vmor %vm2105, %vm2106
        %v2108 = vsel %vm2107, %v2100, %v2104
        %v2109 = vand.u32 2147483647, %v2098
        %vm2110 = vcmp.eq.f32.partialorder %v2109, 8.507059e+37
        %v2111 = vand.u32 %v2098, 2147483648
        %v2112 = vor.u32 1.1754944e-38, %v2111
        %v2113 = vsel %vm2110, %v2112, %v2108
        %v2114 = vmul.f32 1.0, %v2113
        %v2115 = vrcp.pop %v2099
        %v2116 = vmul.f32 %v2099, %v2115
        %v2117 = vsub.f32 1.0, %v2116
        %v2118 = vmul.f32 %v2115, %v2117
        %v2119 = vadd.f32 %v2115, %v2118
        %vm2120 = vweird.f32 %v2099
        %vm2121 = vweird.f32 %v2115
        %vm2122 = vmor %vm2120, %vm2121
        %v2123 = vsel %vm2122, %v2115, %v2119
        %v2124 = vand.u32 2147483647, %v2099
        %vm2125 = vcmp.eq.f32.partialorder %v2124, 8.507059e+37
        %v2126 = vand.u32 %v2099, 2147483648
        %v2127 = vor.u32 1.1754944e-38, %v2126
        %v2128 = vsel %vm2125, %v2127, %v2123
        %v2129 = vmul.f32 1.0, %v2128
        %v2130 = vmul.f32 %v2088, %v2114
        %v2131 = vmul.f32 %v2090, %v2129
        %2134 = vrot.lane.b32.xlu0 %v2088, 64
        %v2135 = vpop.permute.xlu0 %2134
        %2136 = vrot.lane.b32.xlu0 %v2090, 64
        %v2137 = vpop.permute.xlu0 %2136
        %v2140 = vmul.f32 %v2130, %v2135
        %v2141 = vmul.f32 %v2131, %v2137
        %s2142 = scalar_lea.vmem %s12, 32
        %v2143 = vld [vmem:[%s2142] sm:$0xf]
        %v2144 = vld [vmem:[%s2142 + $0x4] sm:$0xf]
        %v2145 = vld [vmem:[%s2142 + $0x8] sm:$0xf]
        %v2146 = vld [vmem:[%s2142 + $0xc] sm:$0xf]
        %v2147 = vld [vmem:[%s2142 + $0x10] sm:$0xf]
        %v2148 = vld [vmem:[%s2142 + $0x14] sm:$0xf]
        %v2149 = vld [vmem:[%s2142 + $0x18] sm:$0xf]
        %v2150 = vld [vmem:[%s2142 + $0x1c] sm:$0xf]
        %v2151 = vpack.c.bf16 %v2141, %v2140
        %v2160 = vunpack.c.l.b16 %v2143
        %v2161 = vunpack.c.l.b16 %v2144
        %v2162 = vunpack.c.l.b16 %v2145
        %v2163 = vunpack.c.l.b16 %v2146
        %v2164 = vunpack.c.l.b16 %v2147
        %v2165 = vunpack.c.l.b16 %v2148
        %v2166 = vunpack.c.l.b16 %v2149
        %v2167 = vunpack.c.l.b16 %v2150
        %v2168 = vpack.c.b16 %v2161, %v2160
        %v2169 = vpack.c.b16 %v2163, %v2162
        %v2170 = vpack.c.b16 %v2165, %v2164
        %v2171 = vpack.c.b16 %v2167, %v2166
        %v2177 = vsel %vm1420, %v2151, 0
        %2179 = vmatpush.bf16.msra.mxu0 0
        %2180 = vmatpush.bf16.msra.mxu0 0
        %2181 = vmatpush.bf16.msra.mxu0 0
        %2182 = vmatpush.bf16.msra.mxu0 0
        %2183 = vmatpush.bf16.msra.mxu0 %v2171
        %2184 = vmatpush.bf16.msra.mxu0 %v2170
        %2185 = vmatpush.bf16.msra.mxu0 %v2169
        %2186 = vmatpush.bf16.msra.mxu0 %v2168
        %2187 = vmatmul.bf16.gmra.mxu0 %v2177
        %v2188 = vpop.f32.mrf.mxu0
        %v2189 = vpop.f32.mrf.mxu0
        %v2190 = vadd.f32 0.0, %v2189
        %2191 = vdwg.mxu0
        %v2192 = vadd.f32 %v2015, %v2190
        %v2193 = vld [vmem:[#allocation7] sm:$0x1]
        %v2194 = vmul.f32 %v2192, %v2192
        %vm2195 = vcmask 254977
        %v2196 = vsel %vm2195, %v2194, 0.0
        %2197 = vadd.xlane.f32.xlu0 %v2196
        %v2198 = vpop.xlane.xlu0 %2197
        %v2199 = vmul.f32 %v2198, %v677
        %v2200 = vadd.f32 %v2199, 1e-06
        %v2201 = vrsqrt.pop %v2200
        %v2202 = vmul.f32 %v2201, %v2200
        %v2203 = vmul.f32 %v2202, %v2201
        %v2204 = vmul.f32 0.5, %v2203
        %v2205 = vsub.f32 1.5, %v2204
        %v2206 = vmul.f32 %v2201, %v2205
        %vm2207 = vweird.f32 %v2200
        %vm2208 = vweird.f32 %v2201
        %vm2209 = vmor %vm2207, %vm2208
        %v2210 = vsel %vm2209, %v2201, %v2206
        %v2211 = vmul.f32 %v2192, %v2210
        %v2213 = vperm.slane %v2193, 0
        %v2215 = vmul.f32 %v2211, %v2213
        %v2216 = vld [vmem:[#allocation8] sm:$0xf]
        %v2217 = vld [vmem:[#allocation8 + $0x4] sm:$0xf]
        %v2218 = vld [vmem:[#allocation8 + $0x8] sm:$0xf]
        %v2219 = vld [vmem:[#allocation8 + $0xc] sm:$0xf]
        %v2220 = vpack.c.bf16 %v2215, %v2215
        %v2221 = vld [vmem:[#allocation10] sm:$0x1]
        %v2223 = vshrl.u32 %v2220, 16
        %v2229 = vunpack.c.l.b16 %v2216
        %v2230 = vunpack.c.l.b16 %v2217
        %v2231 = vunpack.c.l.b16 %v2218
        %v2232 = vunpack.c.l.b16 %v2219
        %v2233 = vpack.c.b16 %v2230, %v2229
        %v2234 = vpack.c.b16 %v2232, %v2231
        %v2238 = vsel %vm663, %v2223, 0
        %2240 = vmatpush.bf16.msra.mxu0 0
        %2241 = vmatpush.bf16.msra.mxu0 0
        %2242 = vmatpush.bf16.msra.mxu0 0
        %2243 = vmatpush.bf16.msra.mxu0 0
        %2244 = vmatpush.bf16.msra.mxu0 0
        %2245 = vmatpush.bf16.msra.mxu0 0
        %2246 = vmatpush.bf16.msra.mxu0 %v2234
        %2247 = vmatpush.bf16.msra.mxu0 %v2233
        %2248 = vmatmul.bf16.gmra.mxu0 %v2238
        %v2249 = vpop.f32.mrf.mxu0
        %v2250 = vadd.f32 %v2221, %v2249
        %v2251 = vpop.f32.mrf.mxu0
        %2252 = vdwg.mxu0
        %2253 = vst [vmem:[%s588] sm:$0x1] %v2250
        %s2254 = sand.u32 %s382, 1
        %s2255 = scalar_lea.sflag [#allocation4], %s2254
        %s2256 = sand.u32 %s382, 1
        %s2257 = scalar_lea.vmem [#allocation11], %s2256
        // Predicated region
        $region105: #{qwen2_fcls_forward.1} parent=83 // pred_check
          %p2258 = pneg %p392
        $region106: #{qwen2_fcls_forward.1} parent=83 // pred_check_branch
          %2260 = sbr.rel (%p2258) target = $region108
        $region107: #{qwen2_fcls_forward.1} parent=83 // pred_region
          %2262 = vsyncadd %s2255, 0
          %s2263 = scalar_lea.hbm %s16, %s33
          %s2265 = sshll.u32 %s2257, 4
          %s2266 = int_to_ptr.vmem [resolvable:$true] %s2265
          %s2267 = sshll.u32 %s2263, 4
          %s2268 = int_to_ptr.hbm [resolvable:$true] %s2267
          %2270 = dma.vmem_to_hbm [thread:$0]  %s2266, 16, %s2268, %s2255
        $region108: #{qwen2_fcls_forward.1} parent=83 // pred_fallthru
          _
      $region84: #{qwen2_fcls_forward.1} parent=5 // pred_fallthru
        _
      %p2271 = scmp.le.s32.totalorder 2, %s28
      // Predicated region
      $region109: #{qwen2_fcls_forward.1} parent=5 // pred_check
        %p2272 = pneg %p2271
      $region110: #{qwen2_fcls_forward.1} parent=5 // pred_check_branch
        %2274 = sbr.rel (%p2272) target = $region112
      $region111: #{qwen2_fcls_forward.1} parent=5 // pred_region
        %s2275 = ssub.s32 %s28, 2
        // Predicated region
        $region113: #{qwen2_fcls_forward.1} parent=111 // pred_check
          %p2276 = pneg %p398
        $region114: #{qwen2_fcls_forward.1} parent=111 // pred_check_branch
          %2278 = sbr.rel (%p2276) target = $region116
        $region115: #{qwen2_fcls_forward.1} parent=111 // pred_region
          %s2279 = sand.u32 %s383, 1
          %s2280 = scalar_lea.sflag [#allocation4], %s2279
          %s2281 = sand.u32 %s383, 1
          %s2282 = scalar_lea.vmem [#allocation11], %s2281
          %2284 = dma.done %s2280, 16
        $region116: #{qwen2_fcls_forward.1} parent=111 // pred_fallthru
          _
      $region112: #{qwen2_fcls_forward.1} parent=5 // pred_fallthru
        _
    $region6: #{qwen2_fcls_forward.1} parent=1 // loop_footer
      %s32 = sadd.s32 1, %s28
    $region7: #{qwen2_fcls_forward.1} parent=1 // loop_footer_branch
      %27 = sbr.rel target = $region3
    $region8: #{qwen2_fcls_forward.1} parent=1 // loop_exit
      _
    %2285 = vsyncpa [#allocation3], 1
    %s2286 = scalar_lea.sflag [#allocation3], 1
    %2287 = vsyncpa %s2286, 1
    %2288 = vsyncpa [#allocation6], 1
    %2289 = vsyncpa [#allocation9], 1
    %2290 = vsyncpa [#allocation4], 1
    %s2291 = scalar_lea.sflag [#allocation4], 1
    %2292 = vsyncpa %s2291, 1

</llo_original>
